<compile_context>
chip_gen: v6e
topology: v6e:2x2x1
jax: 0.10.0
libtpu: 0.0.40
codegen_flags: <defaults>
</compile_context>

<pallas_src>
import math
import functools
import jax
import jax.numpy as jnp
from jax import lax
from jax.experimental import pallas as pl
from jax.experimental.pallas import tpu as pltpu

IMG = 8
N_IN = IMG * IMG      # 64
N_MID = 32
N_OUT = 10
LANES = 128

PI_MIX = 0.5
SIGMA1 = math.exp(-0.0)
SIGMA2 = math.exp(-6.0)
LOG_SQRT_2PI = math.log(math.sqrt(2.0 * math.pi))
LOG_PI = math.log(PI_MIX)
LOG_1MPI = math.log(1.0 - PI_MIX)
LOG_S1 = math.log(SIGMA1)               # 0.0
LOG_S2 = math.log(SIGMA2)               # -6.0
INV_S1_SQ = 1.0 / (SIGMA1 * SIGMA1)
INV_S2_SQ = 1.0 / (SIGMA2 * SIGMA2)     # e^12


def _round_up(n, m):
    return (n + m - 1) // m * m


def _layer_dims(num_layer):
    return [(N_MID, N_IN)] + [(N_MID, N_MID)] * num_layer + [(N_OUT, N_MID)]


def _sheet_layout(num_layer):
    """Row offsets of each layer block inside the (TOT, 128) parameter sheet."""
    dims = _layer_dims(num_layer)
    offs, off = [], 0
    for (o, _i) in dims:
        offs.append(off)
        off += 8 + _round_up(o, 8)      # 1 (padded) bias row-block + weight rows
    return dims, tuple(offs), off       # off == TOT rows (multiple of 8)


# ---------------------------------------------------------------------------
# Fused kernel: sample + log q / log p + MLP + accumulate, one MC sample / step.
# ---------------------------------------------------------------------------
def _make_fused_kernel(num_layer, num_sample):
    dims, row_offs, _tot = _sheet_layout(num_layer)
    n_lin = len(dims)
    inv_n = 1.0 / float(num_sample)

    def kernel(mu_ref, rho_ref, mask_ref, eps_ref, x_ref,
               out_ref, logp_ref, logq_ref):
        s = pl.program_id(0)

        @pl.when(s == 0)
        def _init():
            out_ref[...] = jnp.zeros_like(out_ref)
            logp_ref[...] = jnp.zeros_like(logp_ref)
            logq_ref[...] = jnp.zeros_like(logq_ref)

        mu = mu_ref[...]
        rho = rho_ref[...]
        mask = mask_ref[...]
        eps = eps_ref[0]                                   # (TOT, 128)

        # --- reparameterized sample of every parameter of this MC draw ------
        sigma = jnp.log1p(jnp.exp(rho))                    # Gaussian.sigma
        w = mu + sigma * eps                               # Gaussian.sample

        # --- log q(w | mu, rho):  (w - mu)^2 / (2 sigma^2) == 0.5 * eps^2 ---
        lq_elem = -LOG_SQRT_2PI - jnp.log(sigma) - 0.5 * eps * eps
        lq = jnp.sum(lq_elem * mask)

        # --- scale-mixture prior log p(w) via logaddexp (no exp underflow) --
        w_sq = w * w
        log_n1 = -0.5 * w_sq * INV_S1_SQ - LOG_SQRT_2PI - LOG_S1
        log_n2 = -0.5 * w_sq * INV_S2_SQ - LOG_SQRT_2PI - LOG_S2
        lp_elem = jnp.logaddexp(LOG_PI + log_n1, LOG_1MPI + log_n2)
        lp = jnp.sum(lp_elem * mask)

        # --- MLP on the sampled weights (static slices, no transposes) ------
        dn = (((1,), (1,)), ((), ()))        # contract in_features of x and W(out,in)
        h = x_ref[...]                       # (B, 64)
        for idx, ((o, i_f), r0) in enumerate(zip(dims, row_offs)):
            b_l = w[r0:r0 + 1, 0:o]                         # (1, out)
            w_l = w[r0 + 8:r0 + 8 + o, 0:i_f]               # (out, in)
            h = lax.dot_general(h, w_l, dn,
                                preferred_element_type=jnp.float32) + b_l
            if idx < n_lin - 1:
                h = jnp.maximum(h, 0.0)                     # relu

        # log_softmax over dim=1
        m = jnp.max(h, axis=-1, keepdims=True)
        lse = m + jnp.log(jnp.sum(jnp.exp(h - m), axis=-1, keepdims=True))
        logits = h - lse

        # --- accumulate across MC samples ------------------------------------
        out_ref[...] += logits
        logp_ref[...] += lp.reshape(1, 1)
        logq_ref[...] += lq.reshape(1, 1)

        @pl.when(s == num_sample - 1)
        def _finish():
            out_ref[...] = out_ref[...] * inv_n
            logp_ref[...] = logp_ref[...] * inv_n
            logq_ref[...] = logq_ref[...] * inv_n

    return kernel


def _fused_forward(x2d, mu, rho, mask, eps, num_layer, num_sample):
    B = x2d.shape[0]
    TOT = mu.shape[0]
    kernel = _make_fused_kernel(num_layer, num_sample)
    out, logp, logq = pl.pallas_call(
        kernel,
        grid=(num_sample,),
        out_shape=(
            jax.ShapeDtypeStruct((B, N_OUT), jnp.float32),
            jax.ShapeDtypeStruct((1, 1), jnp.float32),
            jax.ShapeDtypeStruct((1, 1), jnp.float32),
        ),
        in_specs=[
            pl.BlockSpec((TOT, LANES), lambda s: (0, 0)),       # mu (resident)
            pl.BlockSpec((TOT, LANES), lambda s: (0, 0)),       # rho (resident)
            pl.BlockSpec((TOT, LANES), lambda s: (0, 0)),       # mask (resident)
            pl.BlockSpec((1, TOT, LANES), lambda s: (s, 0, 0)),  # eps (per sample)
            pl.BlockSpec((B, N_IN), lambda s: (0, 0)),          # x (resident)
        ],
        out_specs=(
            pl.BlockSpec((B, N_OUT), lambda s: (0, 0)),
            pl.BlockSpec((1, 1), lambda s: (0, 0)),
            pl.BlockSpec((1, 1), lambda s: (0, 0)),
        ),
        compiler_params=pltpu.CompilerParams(
            dimension_semantics=("arbitrary",)),   # accumulator over samples
    )(mu, rho, mask, eps, x2d)
    return out, logp[0, 0], logq[0, 0]


# ---------------------------------------------------------------------------
# Parameter setup (deterministic, mirrors BayesianLinear.__init__ ranges).
# ---------------------------------------------------------------------------
def init_layer(key, fan_out, fan_in):
    k1, k2, k3, k4 = jax.random.split(key, 4)
    w_mu = jax.random.uniform(k1, (fan_out, fan_in), jnp.float32, -0.2, 0.2)
    w_rho = jax.random.uniform(k2, (fan_out, fan_in), jnp.float32, -5.0, -4.0)
    b_mu = jax.random.uniform(k3, (fan_out,), jnp.float32, -0.2, 0.2)
    b_rho = jax.random.uniform(k4, (fan_out,), jnp.float32, -5.0, -4.0)
    return dict(w_mu=w_mu, w_rho=w_rho, b_mu=b_mu, b_rho=b_rho)


def init_params(key, num_layer):
    dims = _layer_dims(num_layer)
    keys = jax.random.split(key, len(dims))
    return [init_layer(k, o, i) for k, (o, i) in zip(keys, dims)]


def _build_sheets(layers, num_layer):
    """Pack all layer params into (TOT, 128) mu / rho / mask sheets."""
    dims, row_offs, tot = _sheet_layout(num_layer)
    mu = jnp.zeros((tot, LANES), jnp.float32)
    rho = jnp.zeros((tot, LANES), jnp.float32)
    mask = jnp.zeros((tot, LANES), jnp.float32)
    for lyr, (o, i_f), r0 in zip(layers, dims, row_offs):
        mu = mu.at[r0, 0:o].set(lyr["b_mu"])
        rho = rho.at[r0, 0:o].set(lyr["b_rho"])
        mask = mask.at[r0, 0:o].set(1.0)
        mu = mu.at[r0 + 8:r0 + 8 + o, 0:i_f].set(lyr["w_mu"])
        rho = rho.at[r0 + 8:r0 + 8 + o, 0:i_f].set(lyr["w_rho"])
        mask = mask.at[r0 + 8:r0 + 8 + o, 0:i_f].set(1.0)
    return mu, rho, mask, tot


# ---------------------------------------------------------------------------
# Net.forward  (always samples, like Net.sampling -> forward_(sample=True)).
# ---------------------------------------------------------------------------
@functools.partial(jax.jit, static_argnames=("num_layer", "num_sample"))
def net_forward(x, layers, eps_key, num_layer, num_sample):
    B = x.shape[0]
    x2d = x.reshape(B, N_IN)                       # x.view(-1, n_in)
    mu, rho, mask, tot = _build_sheets(layers, num_layer)
    eps = jax.random.normal(eps_key, (num_sample, tot, LANES), jnp.float32)
    return _fused_forward(x2d, mu, rho, mask, eps, num_layer, num_sample)


if __name__ == "__main__":
    key = jax.random.PRNGKey(0)
    k_param, k_x, k_eps = jax.random.split(key, 3)

    num_layer, num_sample, batch = 2, 3, 2
    layers = init_params(k_param, num_layer)
    x = jax.random.normal(k_x, (batch, 1, IMG, IMG), jnp.float32)   # NCHW

    out, log_p, log_q = net_forward(x, layers, k_eps, num_layer, num_sample)
    out, log_p, log_q = jax.block_until_ready((out, log_p, log_q))

    assert out.shape == (batch, N_OUT)
    assert out.dtype == jnp.float32
    assert log_p.shape == () and log_q.shape == ()
    assert bool(jnp.all(jnp.isfinite(out)))
    assert bool(jnp.isfinite(log_p)) and bool(jnp.isfinite(log_q))
    print("KERNEL_OK")
</pallas_src>

<mosaic_0001>
module attributes {stable_mosaic.version = 11 : i64} {
  func.func @kernel(%arg0: i32, %arg1: memref<144x128xf32, #tpu.memory_space<vmem>>, %arg2: memref<144x128xf32, #tpu.memory_space<vmem>>, %arg3: memref<144x128xf32, #tpu.memory_space<vmem>>, %arg4: memref<1x144x128xf32, #tpu.memory_space<vmem>>, %arg5: memref<2x64xf32, #tpu.memory_space<vmem>>, %arg6: memref<2x10xf32, #tpu.memory_space<vmem>>, %arg7: memref<1x1xf32, #tpu.memory_space<vmem>>, %arg8: memref<1x1xf32, #tpu.memory_space<vmem>>) attributes {dimension_semantics = [#tpu.dimension_semantics<arbitrary>], iteration_bounds = array<i64: 3>, scalar_prefetch = 0 : i64, scratch_operands = 0 : i64, tpu.core_type = #tpu.core_type<tc>, window_params = [{pipeline_mode = #tpu.pipeline_mode<synchronous>, transform_indices = @transform_0, window_bounds = array<i64: 144, 128>}, {pipeline_mode = #tpu.pipeline_mode<synchronous>, transform_indices = @transform_1, window_bounds = array<i64: 144, 128>}, {pipeline_mode = #tpu.pipeline_mode<synchronous>, transform_indices = @transform_2, window_bounds = array<i64: 144, 128>}, {transform_indices = @transform_3, window_bounds = array<i64: 1, 144, 128>}, {pipeline_mode = #tpu.pipeline_mode<synchronous>, transform_indices = @transform_4, window_bounds = array<i64: 2, 64>}, {pipeline_mode = #tpu.pipeline_mode<synchronous>, transform_indices = @transform_5, window_bounds = array<i64: 2, 10>}, {pipeline_mode = #tpu.pipeline_mode<synchronous>, transform_indices = @transform_6, window_bounds = array<i64: 1, 1>}, {pipeline_mode = #tpu.pipeline_mode<synchronous>, transform_indices = @transform_7, window_bounds = array<i64: 1, 1>}]} {
    %c0_i32 = arith.constant 0 : i32
    %0 = arith.cmpi eq, %arg0, %c0_i32 : i32
    %1 = arith.extui %0 : i1 to i32
    %c0_i32_0 = arith.constant 0 : i32
    %2 = arith.cmpi ne, %1, %c0_i32_0 : i32
    scf.if %2 {
      %cst_47 = arith.constant 0.000000e+00 : f32
      %113 = vector.broadcast %cst_47 : f32 to vector<2x10xf32>
      %c0_48 = arith.constant 0 : index
      %c0_49 = arith.constant 0 : index
      %114 = vector.load %arg6[%c0_48, %c0_49] : memref<2x10xf32, #tpu.memory_space<vmem>>, vector<2x10xf32>
      tpu.vector_store %arg6[%c0_48, %c0_49], %113 {strides = array<i32>} : memref<2x10xf32, #tpu.memory_space<vmem>>, vector<2x10xf32>,
      %cst_50 = arith.constant 0.000000e+00 : f32
      %115 = vector.broadcast %cst_50 : f32 to vector<1x1xf32>
      %c0_51 = arith.constant 0 : index
      %c0_52 = arith.constant 0 : index
      %116 = vector.load %arg7[%c0_51, %c0_52] : memref<1x1xf32, #tpu.memory_space<vmem>>, vector<1x1xf32>
      tpu.vector_store %arg7[%c0_51, %c0_52], %115 {strides = array<i32>} : memref<1x1xf32, #tpu.memory_space<vmem>>, vector<1x1xf32>,
      %cst_53 = arith.constant 0.000000e+00 : f32
      %117 = vector.broadcast %cst_53 : f32 to vector<1x1xf32>
      %c0_54 = arith.constant 0 : index
      %c0_55 = arith.constant 0 : index
      %118 = vector.load %arg8[%c0_54, %c0_55] : memref<1x1xf32, #tpu.memory_space<vmem>>, vector<1x1xf32>
      tpu.vector_store %arg8[%c0_54, %c0_55], %117 {strides = array<i32>} : memref<1x1xf32, #tpu.memory_space<vmem>>, vector<1x1xf32>,
    } else {
    }
    %c0 = arith.constant 0 : index
    %c0_1 = arith.constant 0 : index
    %3 = vector.load %arg1[%c0, %c0_1] : memref<144x128xf32, #tpu.memory_space<vmem>>, vector<144x128xf32>
    %c0_2 = arith.constant 0 : index
    %c0_3 = arith.constant 0 : index
    %4 = vector.load %arg2[%c0_2, %c0_3] : memref<144x128xf32, #tpu.memory_space<vmem>>, vector<144x128xf32>
    %c0_4 = arith.constant 0 : index
    %c0_5 = arith.constant 0 : index
    %5 = vector.load %arg3[%c0_4, %c0_5] : memref<144x128xf32, #tpu.memory_space<vmem>>, vector<144x128xf32>
    %c0_6 = arith.constant 0 : index
    %c0_7 = arith.constant 0 : index
    %c0_8 = arith.constant 0 : index
    %6 = vector.load %arg4[%c0_6, %c0_7, %c0_8] : memref<1x144x128xf32, #tpu.memory_space<vmem>>, vector<1x144x128xf32>
    %7 = vector.shape_cast %6 : vector<1x144x128xf32> to vector<144x128xf32>
    %8 = math.exp %4 : vector<144x128xf32>
    %9 = math.log1p %8 : vector<144x128xf32>
    %10 = arith.mulf %9, %7 : vector<144x128xf32>
    %11 = arith.addf %3, %10 : vector<144x128xf32>
    %12 = math.log %9 : vector<144x128xf32>
    %cst = arith.constant -0.918938517 : f32
    %13 = vector.broadcast %cst : f32 to vector<144x128xf32>
    %14 = arith.subf %13, %12 : vector<144x128xf32>
    %cst_9 = arith.constant 5.000000e-01 : f32
    %15 = vector.broadcast %cst_9 : f32 to vector<144x128xf32>
    %16 = arith.mulf %15, %7 : vector<144x128xf32>
    %17 = arith.mulf %16, %7 : vector<144x128xf32>
    %18 = arith.subf %14, %17 : vector<144x128xf32>
    %19 = arith.mulf %18, %5 : vector<144x128xf32>
    %20 = vector.shape_cast %19 : vector<144x128xf32> to vector<1x144x128xf32>
    %cst_10 = arith.constant dense<0.000000e+00> : vector<1xf32>
    %21 = vector.multi_reduction <add>, %20, %cst_10 [1, 2] : vector<1x144x128xf32> to vector<1xf32>
    %22 = vector.shape_cast %21 : vector<1xf32> to vector<1x1x1xf32>
    %23 = vector.extract %22[0, 0, 0] : f32 from vector<1x1x1xf32>
    %24 = arith.mulf %11, %11 : vector<144x128xf32>
    %cst_11 = arith.constant -5.000000e-01 : f32
    %25 = vector.broadcast %cst_11 : f32 to vector<144x128xf32>
    %26 = arith.mulf %25, %24 : vector<144x128xf32>
    %cst_12 = arith.constant 1.000000e+00 : f32
    %27 = vector.broadcast %cst_12 : f32 to vector<144x128xf32>
    %28 = arith.mulf %26, %27 : vector<144x128xf32>
    %cst_13 = arith.constant 0.918938517 : f32
    %29 = vector.broadcast %cst_13 : f32 to vector<144x128xf32>
    %30 = arith.subf %28, %29 : vector<144x128xf32>
    %cst_14 = arith.constant 0.000000e+00 : f32
    %31 = vector.broadcast %cst_14 : f32 to vector<144x128xf32>
    %32 = arith.subf %30, %31 : vector<144x128xf32>
    %cst_15 = arith.constant -5.000000e-01 : f32
    %33 = vector.broadcast %cst_15 : f32 to vector<144x128xf32>
    %34 = arith.mulf %33, %24 : vector<144x128xf32>
    %cst_16 = arith.constant 162754.797 : f32
    %35 = vector.broadcast %cst_16 : f32 to vector<144x128xf32>
    %36 = arith.mulf %34, %35 : vector<144x128xf32>
    %cst_17 = arith.constant 0.918938517 : f32
    %37 = vector.broadcast %cst_17 : f32 to vector<144x128xf32>
    %38 = arith.subf %36, %37 : vector<144x128xf32>
    %cst_18 = arith.constant -6.000000e+00 : f32
    %39 = vector.broadcast %cst_18 : f32 to vector<144x128xf32>
    %40 = arith.subf %38, %39 : vector<144x128xf32>
    %cst_19 = arith.constant -0.693147182 : f32
    %41 = vector.broadcast %cst_19 : f32 to vector<144x128xf32>
    %42 = arith.addf %41, %32 : vector<144x128xf32>
    %cst_20 = arith.constant -0.693147182 : f32
    %43 = vector.broadcast %cst_20 : f32 to vector<144x128xf32>
    %44 = arith.addf %43, %40 : vector<144x128xf32>
    %45 = arith.maximumf %42, %44 : vector<144x128xf32>
    %46 = arith.subf %42, %44 : vector<144x128xf32>
    %47 = arith.cmpf one, %46, %46 : vector<144x128xf32>
    %48 = arith.addf %42, %44 : vector<144x128xf32>
    %49 = math.absf %46 : vector<144x128xf32>
    %cst_21 = arith.constant 0.000000e+00 : f32
    %50 = vector.broadcast %cst_21 : f32 to vector<144x128xf32>
    %51 = arith.subf %50, %49 : vector<144x128xf32>
    %52 = math.exp %51 : vector<144x128xf32>
    %53 = math.log1p %52 : vector<144x128xf32>
    %54 = arith.addf %45, %53 : vector<144x128xf32>
    %55 = arith.select %47, %48, %54 : vector<144x128xi1>, vector<144x128xf32>
    %56 = arith.mulf %55, %5 : vector<144x128xf32>
    %57 = vector.shape_cast %56 : vector<144x128xf32> to vector<1x144x128xf32>
    %cst_22 = arith.constant dense<0.000000e+00> : vector<1xf32>
    %58 = vector.multi_reduction <add>, %57, %cst_22 [1, 2] : vector<1x144x128xf32> to vector<1xf32>
    %59 = vector.shape_cast %58 : vector<1xf32> to vector<1x1x1xf32>
    %60 = vector.extract %59[0, 0, 0] : f32 from vector<1x1x1xf32>
    %c0_23 = arith.constant 0 : index
    %c0_24 = arith.constant 0 : index
    %61 = vector.load %arg5[%c0_23, %c0_24] : memref<2x64xf32, #tpu.memory_space<vmem>>, vector<2x64xf32>
    %62 = vector.extract_strided_slice %11 {offsets = [0, 0], sizes = [1, 32], strides = [1, 1]} : vector<144x128xf32> to vector<1x32xf32>
    %63 = vector.extract_strided_slice %11 {offsets = [8, 0], sizes = [32, 64], strides = [1, 1]} : vector<144x128xf32> to vector<32x64xf32>
    %cst_25 = arith.constant dense<0.000000e+00> : vector<2x32xf32>
    %64 = tpu.matmul %61, %63, %cst_25 {dimension_numbers = #tpu.dot_dimension_numbers<[1], [1], [0], [0], [0, 0, 1, 0], [], []>} : vector<2x64xf32>, vector<32x64xf32>, vector<2x32xf32> -> vector<2x32xf32>
    %65 = vector.broadcast %62 : vector<1x32xf32> to vector<2x32xf32>
    %66 = arith.addf %64, %65 : vector<2x32xf32>
    %cst_26 = arith.constant 0.000000e+00 : f32
    %67 = vector.broadcast %cst_26 : f32 to vector<2x32xf32>
    %68 = arith.maximumf %66, %67 : vector<2x32xf32>
    %69 = vector.extract_strided_slice %11 {offsets = [40, 0], sizes = [1, 32], strides = [1, 1]} : vector<144x128xf32> to vector<1x32xf32>
    %70 = vector.extract_strided_slice %11 {offsets = [48, 0], sizes = [32, 32], strides = [1, 1]} : vector<144x128xf32> to vector<32x32xf32>
    %cst_27 = arith.constant dense<0.000000e+00> : vector<2x32xf32>
    %71 = tpu.matmul %68, %70, %cst_27 {dimension_numbers = #tpu.dot_dimension_numbers<[1], [1], [0], [0], [0, 0, 1, 0], [], []>} : vector<2x32xf32>, vector<32x32xf32>, vector<2x32xf32> -> vector<2x32xf32>
    %72 = vector.broadcast %69 : vector<1x32xf32> to vector<2x32xf32>
    %73 = arith.addf %71, %72 : vector<2x32xf32>
    %cst_28 = arith.constant 0.000000e+00 : f32
    %74 = vector.broadcast %cst_28 : f32 to vector<2x32xf32>
    %75 = arith.maximumf %73, %74 : vector<2x32xf32>
    %76 = vector.extract_strided_slice %11 {offsets = [80, 0], sizes = [1, 32], strides = [1, 1]} : vector<144x128xf32> to vector<1x32xf32>
    %77 = vector.extract_strided_slice %11 {offsets = [88, 0], sizes = [32, 32], strides = [1, 1]} : vector<144x128xf32> to vector<32x32xf32>
    %cst_29 = arith.constant dense<0.000000e+00> : vector<2x32xf32>
    %78 = tpu.matmul %75, %77, %cst_29 {dimension_numbers = #tpu.dot_dimension_numbers<[1], [1], [0], [0], [0, 0, 1, 0], [], []>} : vector<2x32xf32>, vector<32x32xf32>, vector<2x32xf32> -> vector<2x32xf32>
    %79 = vector.broadcast %76 : vector<1x32xf32> to vector<2x32xf32>
    %80 = arith.addf %78, %79 : vector<2x32xf32>
    %cst_30 = arith.constant 0.000000e+00 : f32
    %81 = vector.broadcast %cst_30 : f32 to vector<2x32xf32>
    %82 = arith.maximumf %80, %81 : vector<2x32xf32>
    %83 = vector.extract_strided_slice %11 {offsets = [120, 0], sizes = [1, 10], strides = [1, 1]} : vector<144x128xf32> to vector<1x10xf32>
    %84 = vector.extract_strided_slice %11 {offsets = [128, 0], sizes = [10, 32], strides = [1, 1]} : vector<144x128xf32> to vector<10x32xf32>
    %cst_31 = arith.constant dense<0.000000e+00> : vector<2x10xf32>
    %85 = tpu.matmul %82, %84, %cst_31 {dimension_numbers = #tpu.dot_dimension_numbers<[1], [1], [0], [0], [0, 0, 1, 0], [], []>} : vector<2x32xf32>, vector<10x32xf32>, vector<2x10xf32> -> vector<2x10xf32>
    %86 = vector.broadcast %83 : vector<1x10xf32> to vector<2x10xf32>
    %87 = arith.addf %85, %86 : vector<2x10xf32>
    %cst_32 = arith.constant dense<0xFF800000> : vector<2xf32>
    %88 = vector.multi_reduction <maximumf>, %87, %cst_32 [1] : vector<2x10xf32> to vector<2xf32>
    %89 = vector.shape_cast %88 : vector<2xf32> to vector<2x1xf32>
    %90 = vector.broadcast %89 : vector<2x1xf32> to vector<2x10xf32>
    %91 = arith.subf %87, %90 : vector<2x10xf32>
    %92 = math.exp %91 : vector<2x10xf32>
    %cst_33 = arith.constant dense<0.000000e+00> : vector<2xf32>
    %93 = vector.multi_reduction <add>, %92, %cst_33 [1] : vector<2x10xf32> to vector<2xf32>
    %94 = vector.shape_cast %93 : vector<2xf32> to vector<2x1xf32>
    %95 = math.log %94 : vector<2x1xf32>
    %96 = arith.addf %89, %95 : vector<2x1xf32>
    %97 = vector.broadcast %96 : vector<2x1xf32> to vector<2x10xf32>
    %98 = arith.subf %87, %97 : vector<2x10xf32>
    %c0_34 = arith.constant 0 : index
    %c0_35 = arith.constant 0 : index
    %99 = vector.load %arg6[%c0_34, %c0_35] : memref<2x10xf32, #tpu.memory_space<vmem>>, vector<2x10xf32>
    %100 = arith.addf %99, %98 : vector<2x10xf32>
    %c0_36 = arith.constant 0 : index
    %c0_37 = arith.constant 0 : index
    %101 = vector.load %arg6[%c0_36, %c0_37] : memref<2x10xf32, #tpu.memory_space<vmem>>, vector<2x10xf32>
    tpu.vector_store %arg6[%c0_36, %c0_37], %100 {strides = array<i32>} : memref<2x10xf32, #tpu.memory_space<vmem>>, vector<2x10xf32>,
    %c0_38 = arith.constant 0 : index
    %c0_39 = arith.constant 0 : index
    %102 = vector.load %arg7[%c0_38, %c0_39] : memref<1x1xf32, #tpu.memory_space<vmem>>, vector<1x1xf32>
    %103 = vector.broadcast %60 : f32 to vector<1x1xf32>
    %104 = arith.addf %102, %103 : vector<1x1xf32>
    %c0_40 = arith.constant 0 : index
    %c0_41 = arith.constant 0 : index
    %105 = vector.load %arg7[%c0_40, %c0_41] : memref<1x1xf32, #tpu.memory_space<vmem>>, vector<1x1xf32>
    tpu.vector_store %arg7[%c0_40, %c0_41], %104 {strides = array<i32>} : memref<1x1xf32, #tpu.memory_space<vmem>>, vector<1x1xf32>,
    %c0_42 = arith.constant 0 : index
    %c0_43 = arith.constant 0 : index
    %106 = vector.load %arg8[%c0_42, %c0_43] : memref<1x1xf32, #tpu.memory_space<vmem>>, vector<1x1xf32>
    %107 = vector.broadcast %23 : f32 to vector<1x1xf32>
    %108 = arith.addf %106, %107 : vector<1x1xf32>
    %c0_44 = arith.constant 0 : index
    %c0_45 = arith.constant 0 : index
    %109 = vector.load %arg8[%c0_44, %c0_45] : memref<1x1xf32, #tpu.memory_space<vmem>>, vector<1x1xf32>
    tpu.vector_store %arg8[%c0_44, %c0_45], %108 {strides = array<i32>} : memref<1x1xf32, #tpu.memory_space<vmem>>, vector<1x1xf32>,
    %c2_i32 = arith.constant 2 : i32
    %110 = arith.cmpi eq, %arg0, %c2_i32 : i32
    %111 = arith.extui %110 : i1 to i32
    %c0_i32_46 = arith.constant 0 : i32
    %112 = arith.cmpi ne, %111, %c0_i32_46 : i32
    scf.if %112 {
      %c0_47 = arith.constant 0 : index
      %c0_48 = arith.constant 0 : index
      %113 = vector.load %arg6[%c0_47, %c0_48] : memref<2x10xf32, #tpu.memory_space<vmem>>, vector<2x10xf32>
      %cst_49 = arith.constant 0.333333343 : f32
      %114 = vector.broadcast %cst_49 : f32 to vector<2x10xf32>
      %115 = arith.mulf %113, %114 : vector<2x10xf32>
      %c0_50 = arith.constant 0 : index
      %c0_51 = arith.constant 0 : index
      %116 = vector.load %arg6[%c0_50, %c0_51] : memref<2x10xf32, #tpu.memory_space<vmem>>, vector<2x10xf32>
      tpu.vector_store %arg6[%c0_50, %c0_51], %115 {strides = array<i32>} : memref<2x10xf32, #tpu.memory_space<vmem>>, vector<2x10xf32>,
      %c0_52 = arith.constant 0 : index
      %c0_53 = arith.constant 0 : index
      %117 = vector.load %arg7[%c0_52, %c0_53] : memref<1x1xf32, #tpu.memory_space<vmem>>, vector<1x1xf32>
      %cst_54 = arith.constant 0.333333343 : f32
      %118 = vector.broadcast %cst_54 : f32 to vector<1x1xf32>
      %119 = arith.mulf %117, %118 : vector<1x1xf32>
      %c0_55 = arith.constant 0 : index
      %c0_56 = arith.constant 0 : index
      %120 = vector.load %arg7[%c0_55, %c0_56] : memref<1x1xf32, #tpu.memory_space<vmem>>, vector<1x1xf32>
      tpu.vector_store %arg7[%c0_55, %c0_56], %119 {strides = array<i32>} : memref<1x1xf32, #tpu.memory_space<vmem>>, vector<1x1xf32>,
      %c0_57 = arith.constant 0 : index
      %c0_58 = arith.constant 0 : index
      %121 = vector.load %arg8[%c0_57, %c0_58] : memref<1x1xf32, #tpu.memory_space<vmem>>, vector<1x1xf32>
      %cst_59 = arith.constant 0.333333343 : f32
      %122 = vector.broadcast %cst_59 : f32 to vector<1x1xf32>
      %123 = arith.mulf %121, %122 : vector<1x1xf32>
      %c0_60 = arith.constant 0 : index
      %c0_61 = arith.constant 0 : index
      %124 = vector.load %arg8[%c0_60, %c0_61] : memref<1x1xf32, #tpu.memory_space<vmem>>, vector<1x1xf32>
      tpu.vector_store %arg8[%c0_60, %c0_61], %123 {strides = array<i32>} : memref<1x1xf32, #tpu.memory_space<vmem>>, vector<1x1xf32>,
    } else {
    }
    return
  }
  func.func @transform_0(%arg0: i32) -> (i32, i32) {
    %c0_i32 = arith.constant 0 : i32
    %c0_i32_0 = arith.constant 0 : i32
    %c0_i32_1 = arith.constant 0 : i32
    return %c0_i32, %c0_i32_0 : i32, i32
  }
  func.func @transform_1(%arg0: i32) -> (i32, i32) {
    %c0_i32 = arith.constant 0 : i32
    %c0_i32_0 = arith.constant 0 : i32
    %c0_i32_1 = arith.constant 0 : i32
    return %c0_i32, %c0_i32_0 : i32, i32
  }
  func.func @transform_2(%arg0: i32) -> (i32, i32) {
    %c0_i32 = arith.constant 0 : i32
    %c0_i32_0 = arith.constant 0 : i32
    %c0_i32_1 = arith.constant 0 : i32
    return %c0_i32, %c0_i32_0 : i32, i32
  }
  func.func @transform_3(%arg0: i32) -> (i32, i32, i32) {
    %c0_i32 = arith.constant 0 : i32
    %c0_i32_0 = arith.constant 0 : i32
    %c0_i32_1 = arith.constant 0 : i32
    return %arg0, %c0_i32, %c0_i32_0 : i32, i32, i32
  }
  func.func @transform_4(%arg0: i32) -> (i32, i32) {
    %c0_i32 = arith.constant 0 : i32
    %c0_i32_0 = arith.constant 0 : i32
    %c0_i32_1 = arith.constant 0 : i32
    return %c0_i32, %c0_i32_0 : i32, i32
  }
  func.func @transform_5(%arg0: i32) -> (i32, i32) {
    %c0_i32 = arith.constant 0 : i32
    %c0_i32_0 = arith.constant 0 : i32
    %c0_i32_1 = arith.constant 0 : i32
    return %c0_i32, %c0_i32_0 : i32, i32
  }
  func.func @transform_6(%arg0: i32) -> (i32, i32) {
    %c0_i32 = arith.constant 0 : i32
    %c0_i32_0 = arith.constant 0 : i32
    %c0_i32_1 = arith.constant 0 : i32
    return %c0_i32, %c0_i32_0 : i32, i32
  }
  func.func @transform_7(%arg0: i32) -> (i32, i32) {
    %c0_i32 = arith.constant 0 : i32
    %c0_i32_0 = arith.constant 0 : i32
    %c0_i32_1 = arith.constant 0 : i32
    return %c0_i32, %c0_i32_0 : i32, i32
  }
}

</mosaic_0001>

<llo_original>
// kernel: net_forward.1
$region0: #{net_forward.1}
  #allocation0 [shape = 'u32[]', space=smem, size = 0x4, offset = 0x4, fixed_abs, tag = 'smem constant byte address 0x4 - core index']
  #allocation1 [shape = 'u32[144,128]{1,0:T(1,128)}', space=vmem, size = 0x12000, scoped, tag = 'internal scratch']
  %s0 = inlined_call_operand.vmem [shape: f32[144,128], index: 0, kind: input, shape index: {}]
  %s1 = inlined_call_operand.vmem [shape: f32[144,128], index: 1, kind: input, shape index: {}]
  %s2 = inlined_call_operand.vmem [shape: f32[144,128], index: 2, kind: input, shape index: {}]
  %s3 = inlined_call_operand.vmem [shape: f32[3,144,128], index: 3, kind: input, shape index: {}]
  %s4 = inlined_call_operand.vmem [shape: f32[2,64], index: 4, kind: input, shape index: {}]
  %s5 = inlined_call_operand.hbm [shape: f32[2,10], index: 5, kind: output, shape index: {0}]
  %s6 = inlined_call_operand.hbm [shape: f32[1,1], index: 6, kind: output, shape index: {1}]
  %s7 = inlined_call_operand.hbm [shape: f32[1,1], index: 7, kind: output, shape index: {2}]
  %8 = xla_tuple %s5, %s6, %s7
  %s9 = sld [smem:[#allocation0]]
  $region77: #{net_forward.1} parent=0
    _
  %s11 = ssub.s32 1, %s9
  %s12 = scalar_select 0, %s11, %s9
  $region1: #{net_forward.1} parent=0
    #allocation2 [shape = 'u8[1024]{0}', space=vmem, size = 0x400, scoped, tag = 'output window, operand 0, single buffered']
    #allocation3 [shape = 's32[2]{0}', space=sflag, size = 0x8, scoped, tag = 'scoped memory for net_forward.1']
    #allocation4 [shape = 'u8[512]{0}', space=vmem, size = 0x400, scoped, tag = 'output window, operand 1, single buffered']
    #allocation5 [shape = 's32[1]{0}', space=sflag, size = 0x4, scoped, tag = 'scoped memory for net_forward.1']
    #allocation6 [shape = 'u8[512]{0}', space=vmem, size = 0x400, scoped, tag = 'output window, operand 2, single buffered']
    %13 = vsyncpa [#allocation3], 0
    %14 = vsyncpa [#allocation5], 0
    loop: start=0, step=1, limit=5
    $region2: #{net_forward.1} parent=1 // loop_pre_header
      _
    $region3: #{net_forward.1} parent=1 // loop_header
      %s16 = sphi 0, %s20
      %p17 = scmp.ge.s32.totalorder %s16, 5
      %s24 = sphi 0, %s24
      %s26 = sphi 0, %s24
      %s27 = sphi 0, %s26
      %s41 = sphi 0, %s27
      %s45 = sphi 0, %s45
      %s47 = sphi 0, %s45
      %s48 = sphi 0, %s47
      %s62 = sphi 0, %s48
      %s66 = sphi 0, %s66
      %s68 = sphi 0, %s66
      %s69 = sphi 0, %s68
      %s83 = sphi 0, %s69
      %s89 = sphi 0, %s91
      %s92 = sphi 0, %s89
      %s93 = sphi 0, %s92
      %s109 = sphi 0, %s93
      %s113 = sphi 0, %s113
      %s115 = sphi 0, %s113
      %s116 = sphi 0, %s115
      %s130 = sphi 0, %s116
      %s134 = sphi 0, %s134
      %s136 = sphi 0, %s134
      %s137 = sphi 0, %s136
      %s151 = sphi 0, %s137
      %s155 = sphi 0, %s155
      %s157 = sphi 0, %s155
      %s158 = sphi 0, %s157
      %s172 = sphi 0, %s158
      %s176 = sphi 0, %s176
      %s178 = sphi 0, %s176
      %s179 = sphi 0, %s178
      %s193 = sphi 0, %s179
    $region4: #{net_forward.1} parent=1 // loop_header_branch
      %19 = sbr.rel (%p17) target = $region8
    $region5: #{net_forward.1} parent=1 // loop_body
      %s21 = ssub.s32 %s16, 1
      %s22 = ssub.s32 %s16, 2
      %s23 = sadd.s32 %s16, 1
      %s25 = sadd.s32 %s24, 1
      %p28 = scmp.eq.s32.totalorder %s16, 2
      %p29 = scmp.ne.s32.totalorder %s24, %s26
      %p30 = scmp.eq.s32.totalorder %s16, 0
      %p31 = por %p29, %p30
      %p32 = scmp.ne.s32.totalorder %s24, %s26
      %p33 = scmp.eq.s32.totalorder %s21, 2
      %p34 = por %p32, %p33
      %p35 = scmp.ne.s32.totalorder %s26, %s27
      %p36 = scmp.eq.s32.totalorder %s21, 0
      %p37 = por %p35, %p36
      %p38 = scmp.ne.s32.totalorder %s26, %s27
      %p39 = scmp.eq.s32.totalorder %s22, 2
      %p40 = por %p38, %p39
      %p42 = scmp.ne.s32.totalorder %s27, %s41
      %p43 = scmp.eq.s32.totalorder %s22, 0
      %p44 = por %p42, %p43
      %s46 = sadd.s32 %s45, 1
      %p49 = scmp.eq.s32.totalorder %s16, 2
      %p50 = scmp.ne.s32.totalorder %s45, %s47
      %p51 = scmp.eq.s32.totalorder %s16, 0
      %p52 = por %p50, %p51
      %p53 = scmp.ne.s32.totalorder %s45, %s47
      %p54 = scmp.eq.s32.totalorder %s21, 2
      %p55 = por %p53, %p54
      %p56 = scmp.ne.s32.totalorder %s47, %s48
      %p57 = scmp.eq.s32.totalorder %s21, 0
      %p58 = por %p56, %p57
      %p59 = scmp.ne.s32.totalorder %s47, %s48
      %p60 = scmp.eq.s32.totalorder %s22, 2
      %p61 = por %p59, %p60
      %p63 = scmp.ne.s32.totalorder %s48, %s62
      %p64 = scmp.eq.s32.totalorder %s22, 0
      %p65 = por %p63, %p64
      %s67 = sadd.s32 %s66, 1
      %p70 = scmp.eq.s32.totalorder %s16, 2
      %p71 = scmp.ne.s32.totalorder %s66, %s68
      %p72 = scmp.eq.s32.totalorder %s16, 0
      %p73 = por %p71, %p72
      %p74 = scmp.ne.s32.totalorder %s66, %s68
      %p75 = scmp.eq.s32.totalorder %s21, 2
      %p76 = por %p74, %p75
      %p77 = scmp.ne.s32.totalorder %s68, %s69
      %p78 = scmp.eq.s32.totalorder %s21, 0
      %p79 = por %p77, %p78
      %p80 = scmp.ne.s32.totalorder %s68, %s69
      %p81 = scmp.eq.s32.totalorder %s22, 2
      %p82 = por %p80, %p81
      %p84 = scmp.ne.s32.totalorder %s69, %s83
      %p85 = scmp.eq.s32.totalorder %s22, 0
      %p86 = por %p84, %p85
      %s87 = ssub.s32 %s16, %s23
      %p88 = scmp.eq.s32.totalorder %s87, 0
      %s90 = sadd.s32 %s89, 1
      %s91 = scalar_select %p88, %s89, %s90
      %p94 = pneg %p88
      %p95 = scmp.eq.s32.totalorder %s16, 2
      %p96 = por %p94, %p95
      %p97 = scmp.ne.s32.totalorder %s89, %s92
      %p98 = scmp.eq.s32.totalorder %s16, 0
      %p99 = por %p97, %p98
      %p100 = scmp.ne.s32.totalorder %s89, %s92
      %p101 = scmp.eq.s32.totalorder %s21, 2
      %p102 = por %p100, %p101
      %p103 = scmp.ne.s32.totalorder %s92, %s93
      %p104 = scmp.eq.s32.totalorder %s21, 0
      %p105 = por %p103, %p104
      %p106 = scmp.ne.s32.totalorder %s92, %s93
      %p107 = scmp.eq.s32.totalorder %s22, 2
      %p108 = por %p106, %p107
      %p110 = scmp.ne.s32.totalorder %s93, %s109
      %p111 = scmp.eq.s32.totalorder %s22, 0
      %p112 = por %p110, %p111
      %s114 = sadd.s32 %s113, 1
      %p117 = scmp.eq.s32.totalorder %s16, 2
      %p118 = scmp.ne.s32.totalorder %s113, %s115
      %p119 = scmp.eq.s32.totalorder %s16, 0
      %p120 = por %p118, %p119
      %p121 = scmp.ne.s32.totalorder %s113, %s115
      %p122 = scmp.eq.s32.totalorder %s21, 2
      %p123 = por %p121, %p122
      %p124 = scmp.ne.s32.totalorder %s115, %s116
      %p125 = scmp.eq.s32.totalorder %s21, 0
      %p126 = por %p124, %p125
      %p127 = scmp.ne.s32.totalorder %s115, %s116
      %p128 = scmp.eq.s32.totalorder %s22, 2
      %p129 = por %p127, %p128
      %p131 = scmp.ne.s32.totalorder %s116, %s130
      %p132 = scmp.eq.s32.totalorder %s22, 0
      %p133 = por %p131, %p132
      %s135 = sadd.s32 %s134, 1
      %p138 = scmp.eq.s32.totalorder %s16, 2
      %p139 = scmp.ne.s32.totalorder %s134, %s136
      %p140 = scmp.eq.s32.totalorder %s16, 0
      %p141 = por %p139, %p140
      %p142 = scmp.ne.s32.totalorder %s134, %s136
      %p143 = scmp.eq.s32.totalorder %s21, 2
      %p144 = por %p142, %p143
      %p145 = scmp.ne.s32.totalorder %s136, %s137
      %p146 = scmp.eq.s32.totalorder %s21, 0
      %p147 = por %p145, %p146
      %p148 = scmp.ne.s32.totalorder %s136, %s137
      %p149 = scmp.eq.s32.totalorder %s22, 2
      %p150 = por %p148, %p149
      %p152 = scmp.ne.s32.totalorder %s137, %s151
      %p153 = scmp.eq.s32.totalorder %s22, 0
      %p154 = por %p152, %p153
      %s156 = sadd.s32 %s155, 1
      %p159 = scmp.eq.s32.totalorder %s16, 2
      %p160 = scmp.ne.s32.totalorder %s155, %s157
      %p161 = scmp.eq.s32.totalorder %s16, 0
      %p162 = por %p160, %p161
      %p163 = scmp.ne.s32.totalorder %s155, %s157
      %p164 = scmp.eq.s32.totalorder %s21, 2
      %p165 = por %p163, %p164
      %p166 = scmp.ne.s32.totalorder %s157, %s158
      %p167 = scmp.eq.s32.totalorder %s21, 0
      %p168 = por %p166, %p167
      %p169 = scmp.ne.s32.totalorder %s157, %s158
      %p170 = scmp.eq.s32.totalorder %s22, 2
      %p171 = por %p169, %p170
      %p173 = scmp.ne.s32.totalorder %s158, %s172
      %p174 = scmp.eq.s32.totalorder %s22, 0
      %p175 = por %p173, %p174
      %s177 = sadd.s32 %s176, 1
      %p180 = scmp.eq.s32.totalorder %s16, 2
      %p181 = scmp.ne.s32.totalorder %s176, %s178
      %p182 = scmp.eq.s32.totalorder %s16, 0
      %p183 = por %p181, %p182
      %p184 = scmp.ne.s32.totalorder %s176, %s178
      %p185 = scmp.eq.s32.totalorder %s21, 2
      %p186 = por %p184, %p185
      %p187 = scmp.ne.s32.totalorder %s178, %s179
      %p188 = scmp.eq.s32.totalorder %s21, 0
      %p189 = por %p187, %p188
      %p190 = scmp.ne.s32.totalorder %s178, %s179
      %p191 = scmp.eq.s32.totalorder %s22, 2
      %p192 = por %p190, %p191
      %p194 = scmp.ne.s32.totalorder %s179, %s193
      %p195 = scmp.eq.s32.totalorder %s22, 0
      %p196 = por %p194, %p195
      %p197 = scmp.le.s32.totalorder 1, %s16
      %p198 = scmp.lt.s32.totalorder %s16, 4
      %p199 = pnand %p197, %p198
      %p200 = pneg %p199
      // Predicated region
      $region9: #{net_forward.1} parent=5 // pred_check
        _
      $region10: #{net_forward.1} parent=5 // pred_check_branch
        %202 = sbr.rel (%p199) target = $region12
      $region11: #{net_forward.1} parent=5 // pred_region
        %s203 = ssub.s32 %s16, 1
        // Predicated region
        $region13: #{net_forward.1} parent=11 // pred_check
          %p204 = pneg %p37
        $region14: #{net_forward.1} parent=11 // pred_check_branch
          %206 = sbr.rel (%p204) target = $region16
        $region15: #{net_forward.1} parent=11 // pred_region
          _
        $region16: #{net_forward.1} parent=11 // pred_fallthru
          _
        // Predicated region
        $region17: #{net_forward.1} parent=11 // pred_check
          %p207 = pneg %p58
        $region18: #{net_forward.1} parent=11 // pred_check_branch
          %209 = sbr.rel (%p207) target = $region20
        $region19: #{net_forward.1} parent=11 // pred_region
          _
        $region20: #{net_forward.1} parent=11 // pred_fallthru
          _
        // Predicated region
        $region21: #{net_forward.1} parent=11 // pred_check
          %p210 = pneg %p79
        $region22: #{net_forward.1} parent=11 // pred_check_branch
          %212 = sbr.rel (%p210) target = $region24
        $region23: #{net_forward.1} parent=11 // pred_region
          _
        $region24: #{net_forward.1} parent=11 // pred_fallthru
          _
        // Predicated region
        $region25: #{net_forward.1} parent=11 // pred_check
          %p213 = pneg %p126
        $region26: #{net_forward.1} parent=11 // pred_check_branch
          %215 = sbr.rel (%p213) target = $region28
        $region27: #{net_forward.1} parent=11 // pred_region
          _
        $region28: #{net_forward.1} parent=11 // pred_fallthru
          _
      $region12: #{net_forward.1} parent=5 // pred_fallthru
        _
      %p216 = scmp.lt.s32.totalorder %s16, 3
      // Predicated region
      $region29: #{net_forward.1} parent=5 // pred_check
        %p217 = pneg %p216
      $region30: #{net_forward.1} parent=5 // pred_check_branch
        %219 = sbr.rel (%p217) target = $region32
      $region31: #{net_forward.1} parent=5 // pred_region
        // Predicated region
        $region33: #{net_forward.1} parent=31 // pred_check
          %p220 = pneg %p99
        $region34: #{net_forward.1} parent=31 // pred_check_branch
          %222 = sbr.rel (%p220) target = $region36
        $region35: #{net_forward.1} parent=31 // pred_region
          %p223 = scmp.lt.s32.totalorder %s16, 2
          %s224 = scalar_select %p223, %s16, 2
          %s225 = smul.addr %s224, 18
          %s226 = smul.addr %s225, 8
          %s227 = scalar_lea.vmem %s3, %s226
        $region36: #{net_forward.1} parent=31 // pred_fallthru
          _
      $region32: #{net_forward.1} parent=5 // pred_fallthru
        _
      %p228 = scmp.le.s32.totalorder 1, %s16
      %p229 = scmp.lt.s32.totalorder %s16, 4
      %p230 = pnand %p228, %p229
      %p231 = pneg %p230
      // Predicated region
      $region37: #{net_forward.1} parent=5 // pred_check
        _
      $region38: #{net_forward.1} parent=5 // pred_check_branch
        %233 = sbr.rel (%p230) target = $region40
      $region39: #{net_forward.1} parent=5 // pred_region
        %s234 = ssub.s32 %s16, 1
        %p235 = pneg %p37
        %p236 = pneg %p34
        %p237 = pneg %p58
        %p238 = pneg %p55
        %p239 = pneg %p79
        %p240 = pneg %p76
        %p241 = scmp.lt.s32.totalorder %s21, 2
        %s242 = scalar_select %p241, %s21, 2
        %s243 = smul.addr %s242, 18
        %s244 = smul.addr %s243, 8
        %s245 = scalar_lea.vmem %s3, %s244
        %p246 = pneg %p105
        %p247 = pneg %p102
        %p248 = pneg %p126
        %p249 = pneg %p123
        %p250 = pneg %p147
        %p251 = pneg %p144
        %p252 = pneg %p168
        %p253 = pneg %p165
        %p254 = pneg %p189
        %p255 = pneg %p186
        %p256 = scmp.lt.s32.totalorder %s21, 2
        %s257 = scalar_select %p256, %s21, 2
        %s258 = smul.addr %s257, 18
        %s259 = smul.addr %s258, 8
        %s260 = scalar_lea.vmem %s3, %s259
        %p261 = scmp.eq.s32.totalorder %s21, 0
        // Predicated region
        $region41: #{net_forward.1} parent=39 // pred_check
          %p262 = pneg %p261
        $region42: #{net_forward.1} parent=39 // pred_check_branch
          %264 = sbr.rel (%p262) target = $region44
        $region43: #{net_forward.1} parent=39 // pred_region
          %vm265 = vcmask 74752
          %266 = vst.msk [vmem:[#allocation2] sm:$0x3] %vm265, 0.0
          %vm267 = vcmask 0
          %268 = vst.msk [vmem:[#allocation4] sm:$0x1] %vm267, 0.0
          %269 = vst.msk [vmem:[#allocation6] sm:$0x1] %vm267, 0.0
        $region44: #{net_forward.1} parent=39 // pred_fallthru
          _
        %v270 = vld [vmem:[%s0] sm:$0xff]
        %v271 = vld [vmem:[%s0 + $0x8] sm:$0xff]
        %v272 = vld [vmem:[%s0 + $0x10] sm:$0xff]
        %v273 = vld [vmem:[%s0 + $0x18] sm:$0xff]
        %v274 = vld [vmem:[%s0 + $0x20] sm:$0xff]
        %v275 = vld [vmem:[%s0 + $0x28] sm:$0xff]
        %v276 = vld [vmem:[%s0 + $0x30] sm:$0xff]
        %v277 = vld [vmem:[%s0 + $0x38] sm:$0xff]
        %v278 = vld [vmem:[%s0 + $0x40] sm:$0xff]
        %v279 = vld [vmem:[%s0 + $0x48] sm:$0xff]
        %v280 = vld [vmem:[%s0 + $0x50] sm:$0xff]
        %v281 = vld [vmem:[%s0 + $0x58] sm:$0xff]
        %v282 = vld [vmem:[%s0 + $0x60] sm:$0xff]
        %v283 = vld [vmem:[%s0 + $0x68] sm:$0xff]
        %v284 = vld [vmem:[%s0 + $0x70] sm:$0xff]
        %v285 = vld [vmem:[%s0 + $0x78] sm:$0xff]
        %v286 = vld [vmem:[%s0 + $0x80] sm:$0xff]
        %v287 = vld [vmem:[%s0 + $0x88] sm:$0xff]
        %v288 = vld [vmem:[%s1] sm:$0xff]
        %v289 = vld [vmem:[%s1 + $0x8] sm:$0xff]
        %v290 = vld [vmem:[%s1 + $0x10] sm:$0xff]
        %v291 = vld [vmem:[%s1 + $0x18] sm:$0xff]
        %v292 = vld [vmem:[%s1 + $0x20] sm:$0xff]
        %v293 = vld [vmem:[%s1 + $0x28] sm:$0xff]
        %v294 = vld [vmem:[%s1 + $0x30] sm:$0xff]
        %v295 = vld [vmem:[%s1 + $0x38] sm:$0xff]
        %v296 = vld [vmem:[%s1 + $0x40] sm:$0xff]
        %v297 = vld [vmem:[%s1 + $0x48] sm:$0xff]
        %v298 = vld [vmem:[%s1 + $0x50] sm:$0xff]
        %v299 = vld [vmem:[%s1 + $0x58] sm:$0xff]
        %v300 = vld [vmem:[%s1 + $0x60] sm:$0xff]
        %v301 = vld [vmem:[%s1 + $0x68] sm:$0xff]
        %v302 = vld [vmem:[%s1 + $0x70] sm:$0xff]
        %v303 = vld [vmem:[%s1 + $0x78] sm:$0xff]
        %v304 = vld [vmem:[%s1 + $0x80] sm:$0xff]
        %v305 = vld [vmem:[%s1 + $0x88] sm:$0xff]
        %v306 = vld [vmem:[%s2] sm:$0xff]
        %v307 = vld [vmem:[%s2 + $0x8] sm:$0xff]
        %v308 = vld [vmem:[%s2 + $0x10] sm:$0xff]
        %v309 = vld [vmem:[%s2 + $0x18] sm:$0xff]
        %v310 = vld [vmem:[%s2 + $0x20] sm:$0xff]
        %v311 = vld [vmem:[%s2 + $0x28] sm:$0xff]
        %v312 = vld [vmem:[%s2 + $0x30] sm:$0xff]
        %v313 = vld [vmem:[%s2 + $0x38] sm:$0xff]
        %v314 = vld [vmem:[%s2 + $0x40] sm:$0xff]
        %v315 = vld [vmem:[%s2 + $0x48] sm:$0xff]
        %v316 = vld [vmem:[%s2 + $0x50] sm:$0xff]
        %v317 = vld [vmem:[%s2 + $0x58] sm:$0xff]
        %v318 = vld [vmem:[%s2 + $0x60] sm:$0xff]
        %v319 = vld [vmem:[%s2 + $0x68] sm:$0xff]
        %v320 = vld [vmem:[%s2 + $0x70] sm:$0xff]
        %v321 = vld [vmem:[%s2 + $0x78] sm:$0xff]
        %v322 = vld [vmem:[%s2 + $0x80] sm:$0xff]
        %v323 = vld [vmem:[%s2 + $0x88] sm:$0xff]
        %v324 = vld [vmem:[%s260] sm:$0xff]
        %v325 = vld [vmem:[%s260 + $0x8] sm:$0xff]
        %v326 = vld [vmem:[%s260 + $0x10] sm:$0xff]
        %v327 = vld [vmem:[%s260 + $0x18] sm:$0xff]
        %v328 = vld [vmem:[%s260 + $0x20] sm:$0xff]
        %v329 = vld [vmem:[%s260 + $0x28] sm:$0xff]
        %v330 = vld [vmem:[%s260 + $0x30] sm:$0xff]
        %v331 = vld [vmem:[%s260 + $0x38] sm:$0xff]
        %v332 = vld [vmem:[%s260 + $0x40] sm:$0xff]
        %v333 = vld [vmem:[%s260 + $0x48] sm:$0xff]
        %v334 = vld [vmem:[%s260 + $0x50] sm:$0xff]
        %v335 = vld [vmem:[%s260 + $0x58] sm:$0xff]
        %v336 = vld [vmem:[%s260 + $0x60] sm:$0xff]
        %v337 = vld [vmem:[%s260 + $0x68] sm:$0xff]
        %v338 = vld [vmem:[%s260 + $0x70] sm:$0xff]
        %v339 = vld [vmem:[%s260 + $0x78] sm:$0xff]
        %v340 = vld [vmem:[%s260 + $0x80] sm:$0xff]
        %v341 = vld [vmem:[%s260 + $0x88] sm:$0xff]
        %v342 = vmul.f32 %v288, 1.442695
        %v343 = vpow.pop %v342
        %v344 = vmul.f32 %v289, 1.442695
        %v345 = vpow.pop %v344
        %v346 = vmul.f32 %v290, 1.442695
        %v347 = vpow.pop %v346
        %v348 = vmul.f32 %v291, 1.442695
        %v349 = vpow.pop %v348
        %v350 = vmul.f32 %v292, 1.442695
        %v351 = vpow.pop %v350
        %v352 = vmul.f32 %v293, 1.442695
        %v353 = vpow.pop %v352
        %v354 = vmul.f32 %v294, 1.442695
        %v355 = vpow.pop %v354
        %v356 = vmul.f32 %v295, 1.442695
        %v357 = vpow.pop %v356
        %v358 = vmul.f32 %v296, 1.442695
        %v359 = vpow.pop %v358
        %v360 = vmul.f32 %v297, 1.442695
        %v361 = vpow.pop %v360
        %v362 = vmul.f32 %v298, 1.442695
        %v363 = vpow.pop %v362
        %v364 = vmul.f32 %v299, 1.442695
        %v365 = vpow.pop %v364
        %v366 = vmul.f32 %v300, 1.442695
        %v367 = vpow.pop %v366
        %v368 = vmul.f32 %v301, 1.442695
        %v369 = vpow.pop %v368
        %v370 = vmul.f32 %v302, 1.442695
        %v371 = vpow.pop %v370
        %v372 = vmul.f32 %v303, 1.442695
        %v373 = vpow.pop %v372
        %v374 = vmul.f32 %v304, 1.442695
        %v375 = vpow.pop %v374
        %v376 = vmul.f32 %v305, 1.442695
        %v377 = vpow.pop %v376
        %v378 = vadd.f32 %v343, 1.0
        %v379 = vlog2.pop %v378
        %v380 = vmul.f32 %v379, 0.6931472
        %v381 = vmul.f32 -0.5, %v343
        %v382 = vadd.f32 %v381, 1.0
        %v383 = vmul.f32 %v382, %v343
        %v384 = vand.u32 2147483647, %v343
        %vm385 = vcmp.lt.f32.partialorder %v384, 0.0004427343
        %v386 = vsel %vm385, %v383, %v380
        %v387 = vadd.f32 %v345, 1.0
        %v388 = vlog2.pop %v387
        %v389 = vmul.f32 %v388, 0.6931472
        %v390 = vmul.f32 -0.5, %v345
        %v391 = vadd.f32 %v390, 1.0
        %v392 = vmul.f32 %v391, %v345
        %v393 = vand.u32 2147483647, %v345
        %vm394 = vcmp.lt.f32.partialorder %v393, 0.0004427343
        %v395 = vsel %vm394, %v392, %v389
        %v396 = vadd.f32 %v347, 1.0
        %v397 = vlog2.pop %v396
        %v398 = vmul.f32 %v397, 0.6931472
        %v399 = vmul.f32 -0.5, %v347
        %v400 = vadd.f32 %v399, 1.0
        %v401 = vmul.f32 %v400, %v347
        %v402 = vand.u32 2147483647, %v347
        %vm403 = vcmp.lt.f32.partialorder %v402, 0.0004427343
        %v404 = vsel %vm403, %v401, %v398
        %v405 = vadd.f32 %v349, 1.0
        %v406 = vlog2.pop %v405
        %v407 = vmul.f32 %v406, 0.6931472
        %v408 = vmul.f32 -0.5, %v349
        %v409 = vadd.f32 %v408, 1.0
        %v410 = vmul.f32 %v409, %v349
        %v411 = vand.u32 2147483647, %v349
        %vm412 = vcmp.lt.f32.partialorder %v411, 0.0004427343
        %v413 = vsel %vm412, %v410, %v407
        %v414 = vadd.f32 %v351, 1.0
        %v415 = vlog2.pop %v414
        %v416 = vmul.f32 %v415, 0.6931472
        %v417 = vmul.f32 -0.5, %v351
        %v418 = vadd.f32 %v417, 1.0
        %v419 = vmul.f32 %v418, %v351
        %v420 = vand.u32 2147483647, %v351
        %vm421 = vcmp.lt.f32.partialorder %v420, 0.0004427343
        %v422 = vsel %vm421, %v419, %v416
        %v423 = vadd.f32 %v353, 1.0
        %v424 = vlog2.pop %v423
        %v425 = vmul.f32 %v424, 0.6931472
        %v426 = vmul.f32 -0.5, %v353
        %v427 = vadd.f32 %v426, 1.0
        %v428 = vmul.f32 %v427, %v353
        %v429 = vand.u32 2147483647, %v353
        %vm430 = vcmp.lt.f32.partialorder %v429, 0.0004427343
        %v431 = vsel %vm430, %v428, %v425
        %v432 = vadd.f32 %v355, 1.0
        %v433 = vlog2.pop %v432
        %v434 = vmul.f32 %v433, 0.6931472
        %v435 = vmul.f32 -0.5, %v355
        %v436 = vadd.f32 %v435, 1.0
        %v437 = vmul.f32 %v436, %v355
        %v438 = vand.u32 2147483647, %v355
        %vm439 = vcmp.lt.f32.partialorder %v438, 0.0004427343
        %v440 = vsel %vm439, %v437, %v434
        %v441 = vadd.f32 %v357, 1.0
        %v442 = vlog2.pop %v441
        %v443 = vmul.f32 %v442, 0.6931472
        %v444 = vmul.f32 -0.5, %v357
        %v445 = vadd.f32 %v444, 1.0
        %v446 = vmul.f32 %v445, %v357
        %v447 = vand.u32 2147483647, %v357
        %vm448 = vcmp.lt.f32.partialorder %v447, 0.0004427343
        %v449 = vsel %vm448, %v446, %v443
        %v450 = vadd.f32 %v359, 1.0
        %v451 = vlog2.pop %v450
        %v452 = vmul.f32 %v451, 0.6931472
        %v453 = vmul.f32 -0.5, %v359
        %v454 = vadd.f32 %v453, 1.0
        %v455 = vmul.f32 %v454, %v359
        %v456 = vand.u32 2147483647, %v359
        %vm457 = vcmp.lt.f32.partialorder %v456, 0.0004427343
        %v458 = vsel %vm457, %v455, %v452
        %v459 = vadd.f32 %v361, 1.0
        %v460 = vlog2.pop %v459
        %v461 = vmul.f32 %v460, 0.6931472
        %v462 = vmul.f32 -0.5, %v361
        %v463 = vadd.f32 %v462, 1.0
        %v464 = vmul.f32 %v463, %v361
        %v465 = vand.u32 2147483647, %v361
        %vm466 = vcmp.lt.f32.partialorder %v465, 0.0004427343
        %v467 = vsel %vm466, %v464, %v461
        %v468 = vadd.f32 %v363, 1.0
        %v469 = vlog2.pop %v468
        %v470 = vmul.f32 %v469, 0.6931472
        %v471 = vmul.f32 -0.5, %v363
        %v472 = vadd.f32 %v471, 1.0
        %v473 = vmul.f32 %v472, %v363
        %v474 = vand.u32 2147483647, %v363
        %vm475 = vcmp.lt.f32.partialorder %v474, 0.0004427343
        %v476 = vsel %vm475, %v473, %v470
        %v477 = vadd.f32 %v365, 1.0
        %v478 = vlog2.pop %v477
        %v479 = vmul.f32 %v478, 0.6931472
        %v480 = vmul.f32 -0.5, %v365
        %v481 = vadd.f32 %v480, 1.0
        %v482 = vmul.f32 %v481, %v365
        %v483 = vand.u32 2147483647, %v365
        %vm484 = vcmp.lt.f32.partialorder %v483, 0.0004427343
        %v485 = vsel %vm484, %v482, %v479
        %v486 = vadd.f32 %v367, 1.0
        %v487 = vlog2.pop %v486
        %v488 = vmul.f32 %v487, 0.6931472
        %v489 = vmul.f32 -0.5, %v367
        %v490 = vadd.f32 %v489, 1.0
        %v491 = vmul.f32 %v490, %v367
        %v492 = vand.u32 2147483647, %v367
        %vm493 = vcmp.lt.f32.partialorder %v492, 0.0004427343
        %v494 = vsel %vm493, %v491, %v488
        %v495 = vadd.f32 %v369, 1.0
        %v496 = vlog2.pop %v495
        %v497 = vmul.f32 %v496, 0.6931472
        %v498 = vmul.f32 -0.5, %v369
        %v499 = vadd.f32 %v498, 1.0
        %v500 = vmul.f32 %v499, %v369
        %v501 = vand.u32 2147483647, %v369
        %vm502 = vcmp.lt.f32.partialorder %v501, 0.0004427343
        %v503 = vsel %vm502, %v500, %v497
        %v504 = vadd.f32 %v371, 1.0
        %v505 = vlog2.pop %v504
        %v506 = vmul.f32 %v505, 0.6931472
        %v507 = vmul.f32 -0.5, %v371
        %v508 = vadd.f32 %v507, 1.0
        %v509 = vmul.f32 %v508, %v371
        %v510 = vand.u32 2147483647, %v371
        %vm511 = vcmp.lt.f32.partialorder %v510, 0.0004427343
        %v512 = vsel %vm511, %v509, %v506
        %v513 = vadd.f32 %v373, 1.0
        %v514 = vlog2.pop %v513
        %v515 = vmul.f32 %v514, 0.6931472
        %v516 = vmul.f32 -0.5, %v373
        %v517 = vadd.f32 %v516, 1.0
        %v518 = vmul.f32 %v517, %v373
        %v519 = vand.u32 2147483647, %v373
        %vm520 = vcmp.lt.f32.partialorder %v519, 0.0004427343
        %v521 = vsel %vm520, %v518, %v515
        %v522 = vadd.f32 %v375, 1.0
        %v523 = vlog2.pop %v522
        %v524 = vmul.f32 %v523, 0.6931472
        %v525 = vmul.f32 -0.5, %v375
        %v526 = vadd.f32 %v525, 1.0
        %v527 = vmul.f32 %v526, %v375
        %v528 = vand.u32 2147483647, %v375
        %vm529 = vcmp.lt.f32.partialorder %v528, 0.0004427343
        %v530 = vsel %vm529, %v527, %v524
        %v531 = vadd.f32 %v377, 1.0
        %v532 = vlog2.pop %v531
        %v533 = vmul.f32 %v532, 0.6931472
        %v534 = vmul.f32 -0.5, %v377
        %v535 = vadd.f32 %v534, 1.0
        %v536 = vmul.f32 %v535, %v377
        %v537 = vand.u32 2147483647, %v377
        %vm538 = vcmp.lt.f32.partialorder %v537, 0.0004427343
        %v539 = vsel %vm538, %v536, %v533
        %v540 = vmul.f32 %v386, %v324
        %v541 = vmul.f32 %v395, %v325
        %v542 = vmul.f32 %v404, %v326
        %v543 = vmul.f32 %v413, %v327
        %v544 = vmul.f32 %v422, %v328
        %v545 = vmul.f32 %v431, %v329
        %v546 = vmul.f32 %v440, %v330
        %v547 = vmul.f32 %v449, %v331
        %v548 = vmul.f32 %v458, %v332
        %v549 = vmul.f32 %v467, %v333
        %v550 = vmul.f32 %v476, %v334
        %v551 = vmul.f32 %v485, %v335
        %v552 = vmul.f32 %v494, %v336
        %v553 = vmul.f32 %v503, %v337
        %v554 = vmul.f32 %v512, %v338
        %v555 = vmul.f32 %v521, %v339
        %v556 = vmul.f32 %v530, %v340
        %v557 = vmul.f32 %v539, %v341
        %v558 = vadd.f32 %v270, %v540
        %v559 = vadd.f32 %v271, %v541
        %v560 = vadd.f32 %v272, %v542
        %v561 = vadd.f32 %v273, %v543
        %v562 = vadd.f32 %v274, %v544
        %v563 = vadd.f32 %v275, %v545
        %v564 = vadd.f32 %v276, %v546
        %v565 = vadd.f32 %v277, %v547
        %v566 = vadd.f32 %v278, %v548
        %v567 = vadd.f32 %v279, %v549
        %v568 = vadd.f32 %v280, %v550
        %v569 = vadd.f32 %v281, %v551
        %v570 = vadd.f32 %v282, %v552
        %v571 = vadd.f32 %v283, %v553
        %v572 = vadd.f32 %v284, %v554
        %v573 = vadd.f32 %v285, %v555
        %v574 = vadd.f32 %v286, %v556
        %v575 = vadd.f32 %v287, %v557
        %v576 = vlog2.pop %v386
        %v577 = vmul.f32 %v576, 0.6931472
        %v578 = vlog2.pop %v395
        %v579 = vmul.f32 %v578, 0.6931472
        %v580 = vlog2.pop %v404
        %v581 = vmul.f32 %v580, 0.6931472
        %v582 = vlog2.pop %v413
        %v583 = vmul.f32 %v582, 0.6931472
        %v584 = vlog2.pop %v422
        %v585 = vmul.f32 %v584, 0.6931472
        %v586 = vlog2.pop %v431
        %v587 = vmul.f32 %v586, 0.6931472
        %v588 = vlog2.pop %v440
        %v589 = vmul.f32 %v588, 0.6931472
        %v590 = vlog2.pop %v449
        %v591 = vmul.f32 %v590, 0.6931472
        %v592 = vlog2.pop %v458
        %v593 = vmul.f32 %v592, 0.6931472
        %v594 = vlog2.pop %v467
        %v595 = vmul.f32 %v594, 0.6931472
        %v596 = vlog2.pop %v476
        %v597 = vmul.f32 %v596, 0.6931472
        %v598 = vlog2.pop %v485
        %v599 = vmul.f32 %v598, 0.6931472
        %v600 = vlog2.pop %v494
        %v601 = vmul.f32 %v600, 0.6931472
        %v602 = vlog2.pop %v503
        %v603 = vmul.f32 %v602, 0.6931472
        %v604 = vlog2.pop %v512
        %v605 = vmul.f32 %v604, 0.6931472
        %v606 = vlog2.pop %v521
        %v607 = vmul.f32 %v606, 0.6931472
        %v608 = vlog2.pop %v530
        %v609 = vmul.f32 %v608, 0.6931472
        %v610 = vlog2.pop %v539
        %v611 = vmul.f32 %v610, 0.6931472
        %v612 = vsub.f32 -0.9189385, %v577
        %v613 = vsub.f32 -0.9189385, %v579
        %v614 = vsub.f32 -0.9189385, %v581
        %v615 = vsub.f32 -0.9189385, %v583
        %v616 = vsub.f32 -0.9189385, %v585
        %v617 = vsub.f32 -0.9189385, %v587
        %v618 = vsub.f32 -0.9189385, %v589
        %v619 = vsub.f32 -0.9189385, %v591
        %v620 = vsub.f32 -0.9189385, %v593
        %v621 = vsub.f32 -0.9189385, %v595
        %v622 = vsub.f32 -0.9189385, %v597
        %v623 = vsub.f32 -0.9189385, %v599
        %v624 = vsub.f32 -0.9189385, %v601
        %v625 = vsub.f32 -0.9189385, %v603
        %v626 = vsub.f32 -0.9189385, %v605
        %v627 = vsub.f32 -0.9189385, %v607
        %v628 = vsub.f32 -0.9189385, %v609
        %v629 = vsub.f32 -0.9189385, %v611
        %v630 = vmul.f32 %v324, 0.5
        %v631 = vmul.f32 %v325, 0.5
        %v632 = vmul.f32 %v326, 0.5
        %v633 = vmul.f32 %v327, 0.5
        %v634 = vmul.f32 %v328, 0.5
        %v635 = vmul.f32 %v329, 0.5
        %v636 = vmul.f32 %v330, 0.5
        %v637 = vmul.f32 %v331, 0.5
        %v638 = vmul.f32 %v332, 0.5
        %v639 = vmul.f32 %v333, 0.5
        %v640 = vmul.f32 %v334, 0.5
        %v641 = vmul.f32 %v335, 0.5
        %v642 = vmul.f32 %v336, 0.5
        %v643 = vmul.f32 %v337, 0.5
        %v644 = vmul.f32 %v338, 0.5
        %v645 = vmul.f32 %v339, 0.5
        %v646 = vmul.f32 %v340, 0.5
        %v647 = vmul.f32 %v341, 0.5
        %v648 = vmul.f32 %v630, %v324
        %v649 = vmul.f32 %v631, %v325
        %v650 = vmul.f32 %v632, %v326
        %v651 = vmul.f32 %v633, %v327
        %v652 = vmul.f32 %v634, %v328
        %v653 = vmul.f32 %v635, %v329
        %v654 = vmul.f32 %v636, %v330
        %v655 = vmul.f32 %v637, %v331
        %v656 = vmul.f32 %v638, %v332
        %v657 = vmul.f32 %v639, %v333
        %v658 = vmul.f32 %v640, %v334
        %v659 = vmul.f32 %v641, %v335
        %v660 = vmul.f32 %v642, %v336
        %v661 = vmul.f32 %v643, %v337
        %v662 = vmul.f32 %v644, %v338
        %v663 = vmul.f32 %v645, %v339
        %v664 = vmul.f32 %v646, %v340
        %v665 = vmul.f32 %v647, %v341
        %v666 = vsub.f32 %v612, %v648
        %v667 = vsub.f32 %v613, %v649
        %v668 = vsub.f32 %v614, %v650
        %v669 = vsub.f32 %v615, %v651
        %v670 = vsub.f32 %v616, %v652
        %v671 = vsub.f32 %v617, %v653
        %v672 = vsub.f32 %v618, %v654
        %v673 = vsub.f32 %v619, %v655
        %v674 = vsub.f32 %v620, %v656
        %v675 = vsub.f32 %v621, %v657
        %v676 = vsub.f32 %v622, %v658
        %v677 = vsub.f32 %v623, %v659
        %v678 = vsub.f32 %v624, %v660
        %v679 = vsub.f32 %v625, %v661
        %v680 = vsub.f32 %v626, %v662
        %v681 = vsub.f32 %v627, %v663
        %v682 = vsub.f32 %v628, %v664
        %v683 = vsub.f32 %v629, %v665
        %v684 = vmul.f32 %v666, %v306
        %v685 = vmul.f32 %v667, %v307
        %v686 = vmul.f32 %v668, %v308
        %v687 = vmul.f32 %v669, %v309
        %v688 = vmul.f32 %v670, %v310
        %v689 = vmul.f32 %v671, %v311
        %v690 = vmul.f32 %v672, %v312
        %v691 = vmul.f32 %v673, %v313
        %v692 = vmul.f32 %v674, %v314
        %v693 = vmul.f32 %v675, %v315
        %v694 = vmul.f32 %v676, %v316
        %v695 = vmul.f32 %v677, %v317
        %v696 = vmul.f32 %v678, %v318
        %v697 = vmul.f32 %v679, %v319
        %v698 = vmul.f32 %v680, %v320
        %v699 = vmul.f32 %v681, %v321
        %v700 = vmul.f32 %v682, %v322
        %v701 = vmul.f32 %v683, %v323
        %v702 = vadd.f32 %v684, %v685
        %v703 = vadd.f32 %v702, %v686
        %v704 = vadd.f32 %v703, %v687
        %v705 = vadd.f32 %v704, %v688
        %v706 = vadd.f32 %v705, %v689
        %v707 = vadd.f32 %v706, %v690
        %v708 = vadd.f32 %v707, %v691
        %v709 = vadd.f32 %v708, %v692
        %v710 = vadd.f32 %v709, %v693
        %v711 = vadd.f32 %v710, %v694
        %v712 = vadd.f32 %v711, %v695
        %v713 = vadd.f32 %v712, %v696
        %v714 = vadd.f32 %v713, %v697
        %v715 = vadd.f32 %v714, %v698
        %v716 = vadd.f32 %v715, %v699
        %v717 = vadd.f32 %v716, %v700
        %v718 = vadd.f32 %v717, %v701
        %719 = vadd.xlane.f32.xlu0 %v718
        %v720 = vpop.xlane.xlu0 %719
        %v721 = vrot.slane %v720, 4
        %v722 = vadd.f32 %v720, %v721
        %v723 = vrot.slane %v722, 2
        %v724 = vadd.f32 %v722, %v723
        %v725 = vrot.slane %v724, 1
        %v726 = vadd.f32 %v724, %v725
        %s727 = vtos %v726
        %v728 = vmul.f32 %v558, %v558
        %v729 = vmul.f32 %v559, %v559
        %v730 = vmul.f32 %v560, %v560
        %v731 = vmul.f32 %v561, %v561
        %v732 = vmul.f32 %v562, %v562
        %v733 = vmul.f32 %v563, %v563
        %v734 = vmul.f32 %v564, %v564
        %v735 = vmul.f32 %v565, %v565
        %v736 = vmul.f32 %v566, %v566
        %v737 = vmul.f32 %v567, %v567
        %v738 = vmul.f32 %v568, %v568
        %v739 = vmul.f32 %v569, %v569
        %v740 = vmul.f32 %v570, %v570
        %v741 = vmul.f32 %v571, %v571
        %v742 = vmul.f32 %v572, %v572
        %v743 = vmul.f32 %v573, %v573
        %v744 = vmul.f32 %v574, %v574
        %v745 = vmul.f32 %v575, %v575
        %v746 = vmul.f32 %v728, -0.5
        %v747 = vmul.f32 %v729, -0.5
        %v748 = vmul.f32 %v730, -0.5
        %v749 = vmul.f32 %v731, -0.5
        %v750 = vmul.f32 %v732, -0.5
        %v751 = vmul.f32 %v733, -0.5
        %v752 = vmul.f32 %v734, -0.5
        %v753 = vmul.f32 %v735, -0.5
        %v754 = vmul.f32 %v736, -0.5
        %v755 = vmul.f32 %v737, -0.5
        %v756 = vmul.f32 %v738, -0.5
        %v757 = vmul.f32 %v739, -0.5
        %v758 = vmul.f32 %v740, -0.5
        %v759 = vmul.f32 %v741, -0.5
        %v760 = vmul.f32 %v742, -0.5
        %v761 = vmul.f32 %v743, -0.5
        %v762 = vmul.f32 %v744, -0.5
        %v763 = vmul.f32 %v745, -0.5
        %v764 = vsub.f32 %v746, 0.9189385
        %v765 = vsub.f32 %v747, 0.9189385
        %v766 = vsub.f32 %v748, 0.9189385
        %v767 = vsub.f32 %v749, 0.9189385
        %v768 = vsub.f32 %v750, 0.9189385
        %v769 = vsub.f32 %v751, 0.9189385
        %v770 = vsub.f32 %v752, 0.9189385
        %v771 = vsub.f32 %v753, 0.9189385
        %v772 = vsub.f32 %v754, 0.9189385
        %v773 = vsub.f32 %v755, 0.9189385
        %v774 = vsub.f32 %v756, 0.9189385
        %v775 = vsub.f32 %v757, 0.9189385
        %v776 = vsub.f32 %v758, 0.9189385
        %v777 = vsub.f32 %v759, 0.9189385
        %v778 = vsub.f32 %v760, 0.9189385
        %v779 = vsub.f32 %v761, 0.9189385
        %v780 = vsub.f32 %v762, 0.9189385
        %v781 = vsub.f32 %v763, 0.9189385
        %v782 = vmul.f32 %v746, 162754.8
        %v783 = vmul.f32 %v747, 162754.8
        %v784 = vmul.f32 %v748, 162754.8
        %v785 = vmul.f32 %v749, 162754.8
        %v786 = vmul.f32 %v750, 162754.8
        %v787 = vmul.f32 %v751, 162754.8
        %v788 = vmul.f32 %v752, 162754.8
        %v789 = vmul.f32 %v753, 162754.8
        %v790 = vmul.f32 %v754, 162754.8
        %v791 = vmul.f32 %v755, 162754.8
        %v792 = vmul.f32 %v756, 162754.8
        %v793 = vmul.f32 %v757, 162754.8
        %v794 = vmul.f32 %v758, 162754.8
        %v795 = vmul.f32 %v759, 162754.8
        %v796 = vmul.f32 %v760, 162754.8
        %v797 = vmul.f32 %v761, 162754.8
        %v798 = vmul.f32 %v762, 162754.8
        %v799 = vmul.f32 %v763, 162754.8
        %v800 = vsub.f32 %v782, 0.9189385
        %v801 = vsub.f32 %v783, 0.9189385
        %v802 = vsub.f32 %v784, 0.9189385
        %v803 = vsub.f32 %v785, 0.9189385
        %v804 = vsub.f32 %v786, 0.9189385
        %v805 = vsub.f32 %v787, 0.9189385
        %v806 = vsub.f32 %v788, 0.9189385
        %v807 = vsub.f32 %v789, 0.9189385
        %v808 = vsub.f32 %v790, 0.9189385
        %v809 = vsub.f32 %v791, 0.9189385
        %v810 = vsub.f32 %v792, 0.9189385
        %v811 = vsub.f32 %v793, 0.9189385
        %v812 = vsub.f32 %v794, 0.9189385
        %v813 = vsub.f32 %v795, 0.9189385
        %v814 = vsub.f32 %v796, 0.9189385
        %v815 = vsub.f32 %v797, 0.9189385
        %v816 = vsub.f32 %v798, 0.9189385
        %v817 = vsub.f32 %v799, 0.9189385
        %v818 = vsub.f32 %v800, -6.0
        %v819 = vsub.f32 %v801, -6.0
        %v820 = vsub.f32 %v802, -6.0
        %v821 = vsub.f32 %v803, -6.0
        %v822 = vsub.f32 %v804, -6.0
        %v823 = vsub.f32 %v805, -6.0
        %v824 = vsub.f32 %v806, -6.0
        %v825 = vsub.f32 %v807, -6.0
        %v826 = vsub.f32 %v808, -6.0
        %v827 = vsub.f32 %v809, -6.0
        %v828 = vsub.f32 %v810, -6.0
        %v829 = vsub.f32 %v811, -6.0
        %v830 = vsub.f32 %v812, -6.0
        %v831 = vsub.f32 %v813, -6.0
        %v832 = vsub.f32 %v814, -6.0
        %v833 = vsub.f32 %v815, -6.0
        %v834 = vsub.f32 %v816, -6.0
        %v835 = vsub.f32 %v817, -6.0
        %v836 = vadd.f32 %v764, -0.6931472
        %v837 = vadd.f32 %v765, -0.6931472
        %v838 = vadd.f32 %v766, -0.6931472
        %v839 = vadd.f32 %v767, -0.6931472
        %v840 = vadd.f32 %v768, -0.6931472
        %v841 = vadd.f32 %v769, -0.6931472
        %v842 = vadd.f32 %v770, -0.6931472
        %v843 = vadd.f32 %v771, -0.6931472
        %v844 = vadd.f32 %v772, -0.6931472
        %v845 = vadd.f32 %v773, -0.6931472
        %v846 = vadd.f32 %v774, -0.6931472
        %v847 = vadd.f32 %v775, -0.6931472
        %v848 = vadd.f32 %v776, -0.6931472
        %v849 = vadd.f32 %v777, -0.6931472
        %v850 = vadd.f32 %v778, -0.6931472
        %v851 = vadd.f32 %v779, -0.6931472
        %v852 = vadd.f32 %v780, -0.6931472
        %v853 = vadd.f32 %v781, -0.6931472
        %v854 = vadd.f32 %v818, -0.6931472
        %v855 = vadd.f32 %v819, -0.6931472
        %v856 = vadd.f32 %v820, -0.6931472
        %v857 = vadd.f32 %v821, -0.6931472
        %v858 = vadd.f32 %v822, -0.6931472
        %v859 = vadd.f32 %v823, -0.6931472
        %v860 = vadd.f32 %v824, -0.6931472
        %v861 = vadd.f32 %v825, -0.6931472
        %v862 = vadd.f32 %v826, -0.6931472
        %v863 = vadd.f32 %v827, -0.6931472
        %v864 = vadd.f32 %v828, -0.6931472
        %v865 = vadd.f32 %v829, -0.6931472
        %v866 = vadd.f32 %v830, -0.6931472
        %v867 = vadd.f32 %v831, -0.6931472
        %v868 = vadd.f32 %v832, -0.6931472
        %v869 = vadd.f32 %v833, -0.6931472
        %v870 = vadd.f32 %v834, -0.6931472
        %v871 = vadd.f32 %v835, -0.6931472
        %v872 = vmax.f32 %v836, %v854
        %v873 = vmax.f32 %v837, %v855
        %v874 = vmax.f32 %v838, %v856
        %v875 = vmax.f32 %v839, %v857
        %v876 = vmax.f32 %v840, %v858
        %v877 = vmax.f32 %v841, %v859
        %v878 = vmax.f32 %v842, %v860
        %v879 = vmax.f32 %v843, %v861
        %v880 = vmax.f32 %v844, %v862
        %v881 = vmax.f32 %v845, %v863
        %v882 = vmax.f32 %v846, %v864
        %v883 = vmax.f32 %v847, %v865
        %v884 = vmax.f32 %v848, %v866
        %v885 = vmax.f32 %v849, %v867
        %v886 = vmax.f32 %v850, %v868
        %v887 = vmax.f32 %v851, %v869
        %v888 = vmax.f32 %v852, %v870
        %v889 = vmax.f32 %v853, %v871
        %v890 = vsub.f32 %v836, %v854
        %v891 = vsub.f32 %v837, %v855
        %v892 = vsub.f32 %v838, %v856
        %v893 = vsub.f32 %v839, %v857
        %v894 = vsub.f32 %v840, %v858
        %v895 = vsub.f32 %v841, %v859
        %v896 = vsub.f32 %v842, %v860
        %v897 = vsub.f32 %v843, %v861
        %v898 = vsub.f32 %v844, %v862
        %v899 = vsub.f32 %v845, %v863
        %v900 = vsub.f32 %v846, %v864
        %v901 = vsub.f32 %v847, %v865
        %v902 = vsub.f32 %v848, %v866
        %v903 = vsub.f32 %v849, %v867
        %v904 = vsub.f32 %v850, %v868
        %v905 = vsub.f32 %v851, %v869
        %v906 = vsub.f32 %v852, %v870
        %v907 = vsub.f32 %v853, %v871
        %vm908 = vcmp.ne.f32.partialorder %v890, %v890
        %vm909 = vcmp.ne.f32.partialorder %v891, %v891
        %vm910 = vcmp.ne.f32.partialorder %v892, %v892
        %vm911 = vcmp.ne.f32.partialorder %v893, %v893
        %vm912 = vcmp.ne.f32.partialorder %v894, %v894
        %vm913 = vcmp.ne.f32.partialorder %v895, %v895
        %vm914 = vcmp.ne.f32.partialorder %v896, %v896
        %vm915 = vcmp.ne.f32.partialorder %v897, %v897
        %vm916 = vcmp.ne.f32.partialorder %v898, %v898
        %vm917 = vcmp.ne.f32.partialorder %v899, %v899
        %vm918 = vcmp.ne.f32.partialorder %v900, %v900
        %vm919 = vcmp.ne.f32.partialorder %v901, %v901
        %vm920 = vcmp.ne.f32.partialorder %v902, %v902
        %vm921 = vcmp.ne.f32.partialorder %v903, %v903
        %vm922 = vcmp.ne.f32.partialorder %v904, %v904
        %vm923 = vcmp.ne.f32.partialorder %v905, %v905
        %vm924 = vcmp.ne.f32.partialorder %v906, %v906
        %vm925 = vcmp.ne.f32.partialorder %v907, %v907
        %v926 = vadd.f32 %v836, %v854
        %v927 = vadd.f32 %v837, %v855
        %v928 = vadd.f32 %v838, %v856
        %v929 = vadd.f32 %v839, %v857
        %v930 = vadd.f32 %v840, %v858
        %v931 = vadd.f32 %v841, %v859
        %v932 = vadd.f32 %v842, %v860
        %v933 = vadd.f32 %v843, %v861
        %v934 = vadd.f32 %v844, %v862
        %v935 = vadd.f32 %v845, %v863
        %v936 = vadd.f32 %v846, %v864
        %v937 = vadd.f32 %v847, %v865
        %v938 = vadd.f32 %v848, %v866
        %v939 = vadd.f32 %v849, %v867
        %v940 = vadd.f32 %v850, %v868
        %v941 = vadd.f32 %v851, %v869
        %v942 = vadd.f32 %v852, %v870
        %v943 = vadd.f32 %v853, %v871
        %v944 = vand.u32 2147483647, %v890
        %v945 = vand.u32 2147483647, %v891
        %v946 = vand.u32 2147483647, %v892
        %v947 = vand.u32 2147483647, %v893
        %v948 = vand.u32 2147483647, %v894
        %v949 = vand.u32 2147483647, %v895
        %v950 = vand.u32 2147483647, %v896
        %v951 = vand.u32 2147483647, %v897
        %v952 = vand.u32 2147483647, %v898
        %v953 = vand.u32 2147483647, %v899
        %v954 = vand.u32 2147483647, %v900
        %v955 = vand.u32 2147483647, %v901
        %v956 = vand.u32 2147483647, %v902
        %v957 = vand.u32 2147483647, %v903
        %v958 = vand.u32 2147483647, %v904
        %v959 = vand.u32 2147483647, %v905
        %v960 = vand.u32 2147483647, %v906
        %v961 = vand.u32 2147483647, %v907
        %v962 = vsub.f32 0.0, %v944
        %v963 = vsub.f32 0.0, %v945
        %v964 = vsub.f32 0.0, %v946
        %v965 = vsub.f32 0.0, %v947
        %v966 = vsub.f32 0.0, %v948
        %v967 = vsub.f32 0.0, %v949
        %v968 = vsub.f32 0.0, %v950
        %v969 = vsub.f32 0.0, %v951
        %v970 = vsub.f32 0.0, %v952
        %v971 = vsub.f32 0.0, %v953
        %v972 = vsub.f32 0.0, %v954
        %v973 = vsub.f32 0.0, %v955
        %v974 = vsub.f32 0.0, %v956
        %v975 = vsub.f32 0.0, %v957
        %v976 = vsub.f32 0.0, %v958
        %v977 = vsub.f32 0.0, %v959
        %v978 = vsub.f32 0.0, %v960
        %v979 = vsub.f32 0.0, %v961
        %v980 = vmul.f32 %v962, 1.442695
        %v981 = vpow.pop %v980
        %v982 = vmul.f32 %v963, 1.442695
        %v983 = vpow.pop %v982
        %v984 = vmul.f32 %v964, 1.442695
        %v985 = vpow.pop %v984
        %v986 = vmul.f32 %v965, 1.442695
        %v987 = vpow.pop %v986
        %v988 = vmul.f32 %v966, 1.442695
        %v989 = vpow.pop %v988
        %v990 = vmul.f32 %v967, 1.442695
        %v991 = vpow.pop %v990
        %v992 = vmul.f32 %v968, 1.442695
        %v993 = vpow.pop %v992
        %v994 = vmul.f32 %v969, 1.442695
        %v995 = vpow.pop %v994
        %v996 = vmul.f32 %v970, 1.442695
        %v997 = vpow.pop %v996
        %v998 = vmul.f32 %v971, 1.442695
        %v999 = vpow.pop %v998
        %v1000 = vmul.f32 %v972, 1.442695
        %v1001 = vpow.pop %v1000
        %v1002 = vmul.f32 %v973, 1.442695
        %v1003 = vpow.pop %v1002
        %v1004 = vmul.f32 %v974, 1.442695
        %v1005 = vpow.pop %v1004
        %v1006 = vmul.f32 %v975, 1.442695
        %v1007 = vpow.pop %v1006
        %v1008 = vmul.f32 %v976, 1.442695
        %v1009 = vpow.pop %v1008
        %v1010 = vmul.f32 %v977, 1.442695
        %v1011 = vpow.pop %v1010
        %v1012 = vmul.f32 %v978, 1.442695
        %v1013 = vpow.pop %v1012
        %v1014 = vmul.f32 %v979, 1.442695
        %v1015 = vpow.pop %v1014
        %v1016 = vadd.f32 %v981, 1.0
        %v1017 = vlog2.pop %v1016
        %v1018 = vmul.f32 %v1017, 0.6931472
        %v1019 = vmul.f32 -0.5, %v981
        %v1020 = vadd.f32 %v1019, 1.0
        %v1021 = vmul.f32 %v1020, %v981
        %v1022 = vand.u32 2147483647, %v981
        %vm1023 = vcmp.lt.f32.partialorder %v1022, 0.0004427343
        %v1024 = vsel %vm1023, %v1021, %v1018
        %v1025 = vadd.f32 %v983, 1.0
        %v1026 = vlog2.pop %v1025
        %v1027 = vmul.f32 %v1026, 0.6931472
        %v1028 = vmul.f32 -0.5, %v983
        %v1029 = vadd.f32 %v1028, 1.0
        %v1030 = vmul.f32 %v1029, %v983
        %v1031 = vand.u32 2147483647, %v983
        %vm1032 = vcmp.lt.f32.partialorder %v1031, 0.0004427343
        %v1033 = vsel %vm1032, %v1030, %v1027
        %v1034 = vadd.f32 %v985, 1.0
        %v1035 = vlog2.pop %v1034
        %v1036 = vmul.f32 %v1035, 0.6931472
        %v1037 = vmul.f32 -0.5, %v985
        %v1038 = vadd.f32 %v1037, 1.0
        %v1039 = vmul.f32 %v1038, %v985
        %v1040 = vand.u32 2147483647, %v985
        %vm1041 = vcmp.lt.f32.partialorder %v1040, 0.0004427343
        %v1042 = vsel %vm1041, %v1039, %v1036
        %v1043 = vadd.f32 %v987, 1.0
        %v1044 = vlog2.pop %v1043
        %v1045 = vmul.f32 %v1044, 0.6931472
        %v1046 = vmul.f32 -0.5, %v987
        %v1047 = vadd.f32 %v1046, 1.0
        %v1048 = vmul.f32 %v1047, %v987
        %v1049 = vand.u32 2147483647, %v987
        %vm1050 = vcmp.lt.f32.partialorder %v1049, 0.0004427343
        %v1051 = vsel %vm1050, %v1048, %v1045
        %v1052 = vadd.f32 %v989, 1.0
        %v1053 = vlog2.pop %v1052
        %v1054 = vmul.f32 %v1053, 0.6931472
        %v1055 = vmul.f32 -0.5, %v989
        %v1056 = vadd.f32 %v1055, 1.0
        %v1057 = vmul.f32 %v1056, %v989
        %v1058 = vand.u32 2147483647, %v989
        %vm1059 = vcmp.lt.f32.partialorder %v1058, 0.0004427343
        %v1060 = vsel %vm1059, %v1057, %v1054
        %v1061 = vadd.f32 %v991, 1.0
        %v1062 = vlog2.pop %v1061
        %v1063 = vmul.f32 %v1062, 0.6931472
        %v1064 = vmul.f32 -0.5, %v991
        %v1065 = vadd.f32 %v1064, 1.0
        %v1066 = vmul.f32 %v1065, %v991
        %v1067 = vand.u32 2147483647, %v991
        %vm1068 = vcmp.lt.f32.partialorder %v1067, 0.0004427343
        %v1069 = vsel %vm1068, %v1066, %v1063
        %v1070 = vadd.f32 %v993, 1.0
        %v1071 = vlog2.pop %v1070
        %v1072 = vmul.f32 %v1071, 0.6931472
        %v1073 = vmul.f32 -0.5, %v993
        %v1074 = vadd.f32 %v1073, 1.0
        %v1075 = vmul.f32 %v1074, %v993
        %v1076 = vand.u32 2147483647, %v993
        %vm1077 = vcmp.lt.f32.partialorder %v1076, 0.0004427343
        %v1078 = vsel %vm1077, %v1075, %v1072
        %v1079 = vadd.f32 %v995, 1.0
        %v1080 = vlog2.pop %v1079
        %v1081 = vmul.f32 %v1080, 0.6931472
        %v1082 = vmul.f32 -0.5, %v995
        %v1083 = vadd.f32 %v1082, 1.0
        %v1084 = vmul.f32 %v1083, %v995
        %v1085 = vand.u32 2147483647, %v995
        %vm1086 = vcmp.lt.f32.partialorder %v1085, 0.0004427343
        %v1087 = vsel %vm1086, %v1084, %v1081
        %v1088 = vadd.f32 %v997, 1.0
        %v1089 = vlog2.pop %v1088
        %v1090 = vmul.f32 %v1089, 0.6931472
        %v1091 = vmul.f32 -0.5, %v997
        %v1092 = vadd.f32 %v1091, 1.0
        %v1093 = vmul.f32 %v1092, %v997
        %v1094 = vand.u32 2147483647, %v997
        %vm1095 = vcmp.lt.f32.partialorder %v1094, 0.0004427343
        %v1096 = vsel %vm1095, %v1093, %v1090
        %v1097 = vadd.f32 %v999, 1.0
        %v1098 = vlog2.pop %v1097
        %v1099 = vmul.f32 %v1098, 0.6931472
        %v1100 = vmul.f32 -0.5, %v999
        %v1101 = vadd.f32 %v1100, 1.0
        %v1102 = vmul.f32 %v1101, %v999
        %v1103 = vand.u32 2147483647, %v999
        %vm1104 = vcmp.lt.f32.partialorder %v1103, 0.0004427343
        %v1105 = vsel %vm1104, %v1102, %v1099
        %v1106 = vadd.f32 %v1001, 1.0
        %v1107 = vlog2.pop %v1106
        %v1108 = vmul.f32 %v1107, 0.6931472
        %v1109 = vmul.f32 -0.5, %v1001
        %v1110 = vadd.f32 %v1109, 1.0
        %v1111 = vmul.f32 %v1110, %v1001
        %v1112 = vand.u32 2147483647, %v1001
        %vm1113 = vcmp.lt.f32.partialorder %v1112, 0.0004427343
        %v1114 = vsel %vm1113, %v1111, %v1108
        %v1115 = vadd.f32 %v1003, 1.0
        %v1116 = vlog2.pop %v1115
        %v1117 = vmul.f32 %v1116, 0.6931472
        %v1118 = vmul.f32 -0.5, %v1003
        %v1119 = vadd.f32 %v1118, 1.0
        %v1120 = vmul.f32 %v1119, %v1003
        %v1121 = vand.u32 2147483647, %v1003
        %vm1122 = vcmp.lt.f32.partialorder %v1121, 0.0004427343
        %v1123 = vsel %vm1122, %v1120, %v1117
        %v1124 = vadd.f32 %v1005, 1.0
        %v1125 = vlog2.pop %v1124
        %v1126 = vmul.f32 %v1125, 0.6931472
        %v1127 = vmul.f32 -0.5, %v1005
        %v1128 = vadd.f32 %v1127, 1.0
        %v1129 = vmul.f32 %v1128, %v1005
        %v1130 = vand.u32 2147483647, %v1005
        %vm1131 = vcmp.lt.f32.partialorder %v1130, 0.0004427343
        %v1132 = vsel %vm1131, %v1129, %v1126
        %v1133 = vadd.f32 %v1007, 1.0
        %v1134 = vlog2.pop %v1133
        %v1135 = vmul.f32 %v1134, 0.6931472
        %v1136 = vmul.f32 -0.5, %v1007
        %v1137 = vadd.f32 %v1136, 1.0
        %v1138 = vmul.f32 %v1137, %v1007
        %v1139 = vand.u32 2147483647, %v1007
        %vm1140 = vcmp.lt.f32.partialorder %v1139, 0.0004427343
        %v1141 = vsel %vm1140, %v1138, %v1135
        %v1142 = vadd.f32 %v1009, 1.0
        %v1143 = vlog2.pop %v1142
        %v1144 = vmul.f32 %v1143, 0.6931472
        %v1145 = vmul.f32 -0.5, %v1009
        %v1146 = vadd.f32 %v1145, 1.0
        %v1147 = vmul.f32 %v1146, %v1009
        %v1148 = vand.u32 2147483647, %v1009
        %vm1149 = vcmp.lt.f32.partialorder %v1148, 0.0004427343
        %v1150 = vsel %vm1149, %v1147, %v1144
        %v1151 = vadd.f32 %v1011, 1.0
        %v1152 = vlog2.pop %v1151
        %v1153 = vmul.f32 %v1152, 0.6931472
        %v1154 = vmul.f32 -0.5, %v1011
        %v1155 = vadd.f32 %v1154, 1.0
        %v1156 = vmul.f32 %v1155, %v1011
        %v1157 = vand.u32 2147483647, %v1011
        %vm1158 = vcmp.lt.f32.partialorder %v1157, 0.0004427343
        %v1159 = vsel %vm1158, %v1156, %v1153
        %v1160 = vadd.f32 %v1013, 1.0
        %v1161 = vlog2.pop %v1160
        %v1162 = vmul.f32 %v1161, 0.6931472
        %v1163 = vmul.f32 -0.5, %v1013
        %v1164 = vadd.f32 %v1163, 1.0
        %v1165 = vmul.f32 %v1164, %v1013
        %v1166 = vand.u32 2147483647, %v1013
        %vm1167 = vcmp.lt.f32.partialorder %v1166, 0.0004427343
        %v1168 = vsel %vm1167, %v1165, %v1162
        %v1169 = vadd.f32 %v1015, 1.0
        %v1170 = vlog2.pop %v1169
        %v1171 = vmul.f32 %v1170, 0.6931472
        %v1172 = vmul.f32 -0.5, %v1015
        %v1173 = vadd.f32 %v1172, 1.0
        %v1174 = vmul.f32 %v1173, %v1015
        %v1175 = vand.u32 2147483647, %v1015
        %vm1176 = vcmp.lt.f32.partialorder %v1175, 0.0004427343
        %v1177 = vsel %vm1176, %v1174, %v1171
        %v1178 = vadd.f32 %v872, %v1024
        %v1179 = vadd.f32 %v873, %v1033
        %v1180 = vadd.f32 %v874, %v1042
        %v1181 = vadd.f32 %v875, %v1051
        %v1182 = vadd.f32 %v876, %v1060
        %v1183 = vadd.f32 %v877, %v1069
        %v1184 = vadd.f32 %v878, %v1078
        %v1185 = vadd.f32 %v879, %v1087
        %v1186 = vadd.f32 %v880, %v1096
        %v1187 = vadd.f32 %v881, %v1105
        %v1188 = vadd.f32 %v882, %v1114
        %v1189 = vadd.f32 %v883, %v1123
        %v1190 = vadd.f32 %v884, %v1132
        %v1191 = vadd.f32 %v885, %v1141
        %v1192 = vadd.f32 %v886, %v1150
        %v1193 = vadd.f32 %v887, %v1159
        %v1194 = vadd.f32 %v888, %v1168
        %v1195 = vadd.f32 %v889, %v1177
        %v1196 = vsel %vm908, %v926, %v1178
        %v1197 = vsel %vm909, %v927, %v1179
        %v1198 = vsel %vm910, %v928, %v1180
        %v1199 = vsel %vm911, %v929, %v1181
        %v1200 = vsel %vm912, %v930, %v1182
        %v1201 = vsel %vm913, %v931, %v1183
        %v1202 = vsel %vm914, %v932, %v1184
        %v1203 = vsel %vm915, %v933, %v1185
        %v1204 = vsel %vm916, %v934, %v1186
        %v1205 = vsel %vm917, %v935, %v1187
        %v1206 = vsel %vm918, %v936, %v1188
        %v1207 = vsel %vm919, %v937, %v1189
        %v1208 = vsel %vm920, %v938, %v1190
        %v1209 = vsel %vm921, %v939, %v1191
        %v1210 = vsel %vm922, %v940, %v1192
        %v1211 = vsel %vm923, %v941, %v1193
        %v1212 = vsel %vm924, %v942, %v1194
        %v1213 = vsel %vm925, %v943, %v1195
        %v1214 = vmul.f32 %v1196, %v306
        %v1215 = vmul.f32 %v1197, %v307
        %v1216 = vmul.f32 %v1198, %v308
        %v1217 = vmul.f32 %v1199, %v309
        %v1218 = vmul.f32 %v1200, %v310
        %v1219 = vmul.f32 %v1201, %v311
        %v1220 = vmul.f32 %v1202, %v312
        %v1221 = vmul.f32 %v1203, %v313
        %v1222 = vmul.f32 %v1204, %v314
        %v1223 = vmul.f32 %v1205, %v315
        %v1224 = vmul.f32 %v1206, %v316
        %v1225 = vmul.f32 %v1207, %v317
        %v1226 = vmul.f32 %v1208, %v318
        %v1227 = vmul.f32 %v1209, %v319
        %v1228 = vmul.f32 %v1210, %v320
        %v1229 = vmul.f32 %v1211, %v321
        %v1230 = vmul.f32 %v1212, %v322
        %v1231 = vmul.f32 %v1213, %v323
        %v1232 = vadd.f32 %v1214, %v1215
        %v1233 = vadd.f32 %v1232, %v1216
        %v1234 = vadd.f32 %v1233, %v1217
        %v1235 = vadd.f32 %v1234, %v1218
        %v1236 = vadd.f32 %v1235, %v1219
        %v1237 = vadd.f32 %v1236, %v1220
        %v1238 = vadd.f32 %v1237, %v1221
        %v1239 = vadd.f32 %v1238, %v1222
        %v1240 = vadd.f32 %v1239, %v1223
        %v1241 = vadd.f32 %v1240, %v1224
        %v1242 = vadd.f32 %v1241, %v1225
        %v1243 = vadd.f32 %v1242, %v1226
        %v1244 = vadd.f32 %v1243, %v1227
        %v1245 = vadd.f32 %v1244, %v1228
        %v1246 = vadd.f32 %v1245, %v1229
        %v1247 = vadd.f32 %v1246, %v1230
        %v1248 = vadd.f32 %v1247, %v1231
        %1249 = vadd.xlane.f32.xlu0 %v1248
        %v1250 = vpop.xlane.xlu0 %1249
        %v1251 = vrot.slane %v1250, 4
        %v1252 = vadd.f32 %v1250, %v1251
        %v1253 = vrot.slane %v1252, 2
        %v1254 = vadd.f32 %v1252, %v1253
        %v1255 = vrot.slane %v1254, 1
        %v1256 = vadd.f32 %v1254, %v1255
        %s1257 = vtos %v1256
        %v1258 = vld [vmem:[%s4] sm:$0x3]
        %v1259 = vlaneseq
        %v1260 = vshrl.u32 %v1259, 7
        %v1261 = vsub.s32 0, %v1260
        %v1262 = vrot.slane %v558, %v1261
        %vm1263 = vcmask 523264
        %v1265 = vsel %vm1263, %v1258, 0
        %v1268 = vsel %vm1263, %v559, 0
        %v1271 = vsel %vm1263, %v560, 0
        %v1274 = vsel %vm1263, %v561, 0
        %v1277 = vsel %vm1263, %v562, 0
        %1279 = vmatprep.subr.mxu0 0.0
        %1280 = vmatpush1.xpose.msra.mxu0 0.0
        %1281 = vmatprep.subr.mxu0 0.0
        %1282 = vmatpush1.xpose.msra.mxu0 0.0
        %1283 = vmatprep.subr.mxu0 0.0
        %1284 = vmatpush1.xpose.msra.mxu0 0.0
        %1285 = vmatprep.subr.mxu0 0.0
        %1286 = vmatpush1.xpose.msra.mxu0 0.0
        %1287 = vmatprep.subr.mxu0 0.0
        %1288 = vmatpush1.xpose.msra.mxu0 0.0
        %1289 = vmatprep.subr.mxu0 0.0
        %1290 = vmatpush1.xpose.msra.mxu0 0.0
        %1291 = vmatprep.subr.mxu0 0.0
        %1292 = vmatpush1.xpose.msra.mxu0 0.0
        %1293 = vmatprep.subr.mxu0 0.0
        %1294 = vmatpush1.xpose.msra.mxu0 0.0
        %1295 = vmatprep.subr.mxu0 0.0
        %1296 = vmatpush1.xpose.msra.mxu0 0.0
        %1297 = vmatprep.subr.mxu0 0.0
        %1298 = vmatpush1.xpose.msra.mxu0 0.0
        %1299 = vmatprep.subr.mxu0 0.0
        %1300 = vmatpush1.xpose.msra.mxu0 0.0
        %1301 = vmatprep.subr.mxu0 0.0
        %1302 = vmatpush1.xpose.msra.mxu0 0.0
        %1303 = vmatprep.subr.mxu0 0.0
        %1304 = vmatpush1.xpose.msra.mxu0 %v1277
        %1305 = vmatprep.subr.mxu0 0.0
        %1306 = vmatpush1.xpose.msra.mxu0 %v1274
        %1307 = vmatprep.subr.mxu0 0.0
        %1308 = vmatpush1.xpose.msra.mxu0 %v1271
        %1309 = vmatprep.subr.mxu0 0.0
        %1310 = vmatpush1.xpose.msra.mxu0 %v1268
        %1311 = vmatprep.subr.mxu0 0.0
        %1312 = vmatpush2.xpose.msra.mxu0 0.0
        %1313 = vmatprep.subr.mxu0 0.0
        %1314 = vmatpush2.xpose.msra.mxu0 0.0
        %1315 = vmatprep.subr.mxu0 0.0
        %1316 = vmatpush2.xpose.msra.mxu0 0.0
        %1317 = vmatprep.subr.mxu0 0.0
        %1318 = vmatpush2.xpose.msra.mxu0 0.0
        %1319 = vmatprep.subr.mxu0 0.0
        %1320 = vmatpush2.xpose.msra.mxu0 0.0
        %1321 = vmatprep.subr.mxu0 0.0
        %1322 = vmatpush2.xpose.msra.mxu0 0.0
        %1323 = vmatprep.subr.mxu0 0.0
        %1324 = vmatpush2.xpose.msra.mxu0 0.0
        %1325 = vmatprep.subr.mxu0 0.0
        %1326 = vmatpush2.xpose.msra.mxu0 0.0
        %1327 = vmatprep.subr.mxu0 0.0
        %1328 = vmatpush2.xpose.msra.mxu0 0.0
        %1329 = vmatprep.subr.mxu0 0.0
        %1330 = vmatpush2.xpose.msra.mxu0 0.0
        %1331 = vmatprep.subr.mxu0 0.0
        %1332 = vmatpush2.xpose.msra.mxu0 0.0
        %1333 = vmatprep.subr.mxu0 0.0
        %1334 = vmatpush2.xpose.msra.mxu0 0.0
        %1335 = vmatprep.subr.mxu0 0.0
        %1336 = vmatpush2.xpose.msra.mxu0 0.0
        %1337 = vmatprep.subr.mxu0 0.0
        %1338 = vmatpush2.xpose.msra.mxu0 0.0
        %1339 = vmatprep.subr.mxu0 0.0
        %1340 = vmatpush2.xpose.msra.mxu0 0.0
        %1341 = vmatprep.subr.mxu0 0.0
        %1342 = vmatpush2.xpose.msra.mxu0 0.0
        %1343 = vmatprep.mubr.f32.mxu0 0.0
        %1344 = vmatmul.mubr.f32.gmra.mxu0 %v1265
        %v1345 = vpop.f32.mrf.mxu0
        %v1346 = vadd.f32 %v1262, %v1345
        %v1347 = vpop.f32.mrf.mxu0
        %1348 = vdwg.mxu0
        %v1349 = vmax.f32 %v1346, 0.0
        %v1350 = vlaneseq
        %v1351 = vshrl.u32 %v1350, 7
        %v1352 = vsub.s32 0, %v1351
        %v1353 = vrot.slane %v563, %v1352
        %vm1354 = vcmask 261120
        %v1356 = vsel %vm1354, %v1349, 0
        %v1359 = vsel %vm1354, %v564, 0
        %v1362 = vsel %vm1354, %v565, 0
        %v1365 = vsel %vm1354, %v566, 0
        %v1368 = vsel %vm1354, %v567, 0
        %1370 = vmatprep.subr.mxu0 0.0
        %1371 = vmatpush1.xpose.msra.mxu0 0.0
        %1372 = vmatprep.subr.mxu0 0.0
        %1373 = vmatpush1.xpose.msra.mxu0 0.0
        %1374 = vmatprep.subr.mxu0 0.0
        %1375 = vmatpush1.xpose.msra.mxu0 0.0
        %1376 = vmatprep.subr.mxu0 0.0
        %1377 = vmatpush1.xpose.msra.mxu0 0.0
        %1378 = vmatprep.subr.mxu0 0.0
        %1379 = vmatpush1.xpose.msra.mxu0 0.0
        %1380 = vmatprep.subr.mxu0 0.0
        %1381 = vmatpush1.xpose.msra.mxu0 0.0
        %1382 = vmatprep.subr.mxu0 0.0
        %1383 = vmatpush1.xpose.msra.mxu0 0.0
        %1384 = vmatprep.subr.mxu0 0.0
        %1385 = vmatpush1.xpose.msra.mxu0 0.0
        %1386 = vmatprep.subr.mxu0 0.0
        %1387 = vmatpush1.xpose.msra.mxu0 0.0
        %1388 = vmatprep.subr.mxu0 0.0
        %1389 = vmatpush1.xpose.msra.mxu0 0.0
        %1390 = vmatprep.subr.mxu0 0.0
        %1391 = vmatpush1.xpose.msra.mxu0 0.0
        %1392 = vmatprep.subr.mxu0 0.0
        %1393 = vmatpush1.xpose.msra.mxu0 0.0
        %1394 = vmatprep.subr.mxu0 0.0
        %1395 = vmatpush1.xpose.msra.mxu0 %v1368
        %1396 = vmatprep.subr.mxu0 0.0
        %1397 = vmatpush1.xpose.msra.mxu0 %v1365
        %1398 = vmatprep.subr.mxu0 0.0
        %1399 = vmatpush1.xpose.msra.mxu0 %v1362
        %1400 = vmatprep.subr.mxu0 0.0
        %1401 = vmatpush1.xpose.msra.mxu0 %v1359
        %1402 = vmatprep.subr.mxu0 0.0
        %1403 = vmatpush2.xpose.msra.mxu0 0.0
        %1404 = vmatprep.subr.mxu0 0.0
        %1405 = vmatpush2.xpose.msra.mxu0 0.0
        %1406 = vmatprep.subr.mxu0 0.0
        %1407 = vmatpush2.xpose.msra.mxu0 0.0
        %1408 = vmatprep.subr.mxu0 0.0
        %1409 = vmatpush2.xpose.msra.mxu0 0.0
        %1410 = vmatprep.subr.mxu0 0.0
        %1411 = vmatpush2.xpose.msra.mxu0 0.0
        %1412 = vmatprep.subr.mxu0 0.0
        %1413 = vmatpush2.xpose.msra.mxu0 0.0
        %1414 = vmatprep.subr.mxu0 0.0
        %1415 = vmatpush2.xpose.msra.mxu0 0.0
        %1416 = vmatprep.subr.mxu0 0.0
        %1417 = vmatpush2.xpose.msra.mxu0 0.0
        %1418 = vmatprep.subr.mxu0 0.0
        %1419 = vmatpush2.xpose.msra.mxu0 0.0
        %1420 = vmatprep.subr.mxu0 0.0
        %1421 = vmatpush2.xpose.msra.mxu0 0.0
        %1422 = vmatprep.subr.mxu0 0.0
        %1423 = vmatpush2.xpose.msra.mxu0 0.0
        %1424 = vmatprep.subr.mxu0 0.0
        %1425 = vmatpush2.xpose.msra.mxu0 0.0
        %1426 = vmatprep.subr.mxu0 0.0
        %1427 = vmatpush2.xpose.msra.mxu0 0.0
        %1428 = vmatprep.subr.mxu0 0.0
        %1429 = vmatpush2.xpose.msra.mxu0 0.0
        %1430 = vmatprep.subr.mxu0 0.0
        %1431 = vmatpush2.xpose.msra.mxu0 0.0
        %1432 = vmatprep.subr.mxu0 0.0
        %1433 = vmatpush2.xpose.msra.mxu0 0.0
        %1434 = vmatprep.mubr.f32.mxu0 0.0
        %1435 = vmatmul.mubr.f32.gmra.mxu0 %v1356
        %v1436 = vpop.f32.mrf.mxu0
        %v1437 = vadd.f32 %v1353, %v1436
        %v1438 = vpop.f32.mrf.mxu0
        %1439 = vdwg.mxu0
        %v1440 = vmax.f32 %v1437, 0.0
        %v1441 = vlaneseq
        %v1442 = vshrl.u32 %v1441, 7
        %v1443 = vsub.s32 0, %v1442
        %v1444 = vrot.slane %v568, %v1443
        %v1446 = vsel %vm1354, %v1440, 0
        %v1449 = vsel %vm1354, %v569, 0
        %v1452 = vsel %vm1354, %v570, 0
        %v1455 = vsel %vm1354, %v571, 0
        %v1458 = vsel %vm1354, %v572, 0
        %1460 = vmatprep.subr.mxu0 0.0
        %1461 = vmatpush1.xpose.msra.mxu0 0.0
        %1462 = vmatprep.subr.mxu0 0.0
        %1463 = vmatpush1.xpose.msra.mxu0 0.0
        %1464 = vmatprep.subr.mxu0 0.0
        %1465 = vmatpush1.xpose.msra.mxu0 0.0
        %1466 = vmatprep.subr.mxu0 0.0
        %1467 = vmatpush1.xpose.msra.mxu0 0.0
        %1468 = vmatprep.subr.mxu0 0.0
        %1469 = vmatpush1.xpose.msra.mxu0 0.0
        %1470 = vmatprep.subr.mxu0 0.0
        %1471 = vmatpush1.xpose.msra.mxu0 0.0
        %1472 = vmatprep.subr.mxu0 0.0
        %1473 = vmatpush1.xpose.msra.mxu0 0.0
        %1474 = vmatprep.subr.mxu0 0.0
        %1475 = vmatpush1.xpose.msra.mxu0 0.0
        %1476 = vmatprep.subr.mxu0 0.0
        %1477 = vmatpush1.xpose.msra.mxu0 0.0
        %1478 = vmatprep.subr.mxu0 0.0
        %1479 = vmatpush1.xpose.msra.mxu0 0.0
        %1480 = vmatprep.subr.mxu0 0.0
        %1481 = vmatpush1.xpose.msra.mxu0 0.0
        %1482 = vmatprep.subr.mxu0 0.0
        %1483 = vmatpush1.xpose.msra.mxu0 0.0
        %1484 = vmatprep.subr.mxu0 0.0
        %1485 = vmatpush1.xpose.msra.mxu0 %v1458
        %1486 = vmatprep.subr.mxu0 0.0
        %1487 = vmatpush1.xpose.msra.mxu0 %v1455
        %1488 = vmatprep.subr.mxu0 0.0
        %1489 = vmatpush1.xpose.msra.mxu0 %v1452
        %1490 = vmatprep.subr.mxu0 0.0
        %1491 = vmatpush1.xpose.msra.mxu0 %v1449
        %1492 = vmatprep.subr.mxu0 0.0
        %1493 = vmatpush2.xpose.msra.mxu0 0.0
        %1494 = vmatprep.subr.mxu0 0.0
        %1495 = vmatpush2.xpose.msra.mxu0 0.0
        %1496 = vmatprep.subr.mxu0 0.0
        %1497 = vmatpush2.xpose.msra.mxu0 0.0
        %1498 = vmatprep.subr.mxu0 0.0
        %1499 = vmatpush2.xpose.msra.mxu0 0.0
        %1500 = vmatprep.subr.mxu0 0.0
        %1501 = vmatpush2.xpose.msra.mxu0 0.0
        %1502 = vmatprep.subr.mxu0 0.0
        %1503 = vmatpush2.xpose.msra.mxu0 0.0
        %1504 = vmatprep.subr.mxu0 0.0
        %1505 = vmatpush2.xpose.msra.mxu0 0.0
        %1506 = vmatprep.subr.mxu0 0.0
        %1507 = vmatpush2.xpose.msra.mxu0 0.0
        %1508 = vmatprep.subr.mxu0 0.0
        %1509 = vmatpush2.xpose.msra.mxu0 0.0
        %1510 = vmatprep.subr.mxu0 0.0
        %1511 = vmatpush2.xpose.msra.mxu0 0.0
        %1512 = vmatprep.subr.mxu0 0.0
        %1513 = vmatpush2.xpose.msra.mxu0 0.0
        %1514 = vmatprep.subr.mxu0 0.0
        %1515 = vmatpush2.xpose.msra.mxu0 0.0
        %1516 = vmatprep.subr.mxu0 0.0
        %1517 = vmatpush2.xpose.msra.mxu0 0.0
        %1518 = vmatprep.subr.mxu0 0.0
        %1519 = vmatpush2.xpose.msra.mxu0 0.0
        %1520 = vmatprep.subr.mxu0 0.0
        %1521 = vmatpush2.xpose.msra.mxu0 0.0
        %1522 = vmatprep.subr.mxu0 0.0
        %1523 = vmatpush2.xpose.msra.mxu0 0.0
        %1524 = vmatprep.mubr.f32.mxu0 0.0
        %1525 = vmatmul.mubr.f32.gmra.mxu0 %v1446
        %v1526 = vpop.f32.mrf.mxu0
        %v1527 = vadd.f32 %v1444, %v1526
        %v1528 = vpop.f32.mrf.mxu0
        %1529 = vdwg.mxu0
        %v1530 = vmax.f32 %v1527, 0.0
        %v1531 = vlaneseq
        %v1532 = vshrl.u32 %v1531, 7
        %v1533 = vsub.s32 0, %v1532
        %v1534 = vrot.slane %v573, %v1533
        %v1536 = vsel %vm1354, %v1530, 0
        %v1539 = vsel %vm1354, %v574, 0
        %v1542 = vsel %vm1354, %v575, 0
        %1544 = vmatprep.subr.mxu0 0.0
        %1545 = vmatpush1.xpose.msra.mxu0 0.0
        %1546 = vmatprep.subr.mxu0 0.0
        %1547 = vmatpush1.xpose.msra.mxu0 0.0
        %1548 = vmatprep.subr.mxu0 0.0
        %1549 = vmatpush1.xpose.msra.mxu0 0.0
        %1550 = vmatprep.subr.mxu0 0.0
        %1551 = vmatpush1.xpose.msra.mxu0 0.0
        %1552 = vmatprep.subr.mxu0 0.0
        %1553 = vmatpush1.xpose.msra.mxu0 0.0
        %1554 = vmatprep.subr.mxu0 0.0
        %1555 = vmatpush1.xpose.msra.mxu0 0.0
        %1556 = vmatprep.subr.mxu0 0.0
        %1557 = vmatpush1.xpose.msra.mxu0 0.0
        %1558 = vmatprep.subr.mxu0 0.0
        %1559 = vmatpush1.xpose.msra.mxu0 0.0
        %1560 = vmatprep.subr.mxu0 0.0
        %1561 = vmatpush1.xpose.msra.mxu0 0.0
        %1562 = vmatprep.subr.mxu0 0.0
        %1563 = vmatpush1.xpose.msra.mxu0 0.0
        %1564 = vmatprep.subr.mxu0 0.0
        %1565 = vmatpush1.xpose.msra.mxu0 0.0
        %1566 = vmatprep.subr.mxu0 0.0
        %1567 = vmatpush1.xpose.msra.mxu0 0.0
        %1568 = vmatprep.subr.mxu0 0.0
        %1569 = vmatpush1.xpose.msra.mxu0 0.0
        %1570 = vmatprep.subr.mxu0 0.0
        %1571 = vmatpush1.xpose.msra.mxu0 0.0
        %1572 = vmatprep.subr.mxu0 0.0
        %1573 = vmatpush1.xpose.msra.mxu0 %v1542
        %1574 = vmatprep.subr.mxu0 0.0
        %1575 = vmatpush1.xpose.msra.mxu0 %v1539
        %1576 = vmatprep.subr.mxu0 0.0
        %1577 = vmatpush2.xpose.msra.mxu0 0.0
        %1578 = vmatprep.subr.mxu0 0.0
        %1579 = vmatpush2.xpose.msra.mxu0 0.0
        %1580 = vmatprep.subr.mxu0 0.0
        %1581 = vmatpush2.xpose.msra.mxu0 0.0
        %1582 = vmatprep.subr.mxu0 0.0
        %1583 = vmatpush2.xpose.msra.mxu0 0.0
        %1584 = vmatprep.subr.mxu0 0.0
        %1585 = vmatpush2.xpose.msra.mxu0 0.0
        %1586 = vmatprep.subr.mxu0 0.0
        %1587 = vmatpush2.xpose.msra.mxu0 0.0
        %1588 = vmatprep.subr.mxu0 0.0
        %1589 = vmatpush2.xpose.msra.mxu0 0.0
        %1590 = vmatprep.subr.mxu0 0.0
        %1591 = vmatpush2.xpose.msra.mxu0 0.0
        %1592 = vmatprep.subr.mxu0 0.0
        %1593 = vmatpush2.xpose.msra.mxu0 0.0
        %1594 = vmatprep.subr.mxu0 0.0
        %1595 = vmatpush2.xpose.msra.mxu0 0.0
        %1596 = vmatprep.subr.mxu0 0.0
        %1597 = vmatpush2.xpose.msra.mxu0 0.0
        %1598 = vmatprep.subr.mxu0 0.0
        %1599 = vmatpush2.xpose.msra.mxu0 0.0
        %1600 = vmatprep.subr.mxu0 0.0
        %1601 = vmatpush2.xpose.msra.mxu0 0.0
        %1602 = vmatprep.subr.mxu0 0.0
        %1603 = vmatpush2.xpose.msra.mxu0 0.0
        %1604 = vmatprep.subr.mxu0 0.0
        %1605 = vmatpush2.xpose.msra.mxu0 0.0
        %1606 = vmatprep.subr.mxu0 0.0
        %1607 = vmatpush2.xpose.msra.mxu0 0.0
        %1608 = vmatprep.mubr.f32.mxu0 0.0
        %1609 = vmatmul.mubr.f32.gmra.mxu0 %v1536
        %v1610 = vpop.f32.mrf.mxu0
        %v1611 = vadd.f32 %v1534, %v1610
        %v1612 = vpop.f32.mrf.mxu0
        %1613 = vdwg.mxu0
        %vm1614 = vcmask 74752
        %v1615 = vsel %vm1614, %v1611, -inf
        %1616 = vmax.xlane.f32.xlu0 %v1615
        %v1617 = vpop.xlane.xlu0 %1616
        %v1618 = vsub.f32 %v1611, %v1617
        %v1619 = vmul.f32 %v1618, 1.442695
        %v1620 = vpow.pop %v1619
        %v1621 = vsel %vm1614, %v1620, 0.0
        %1622 = vadd.xlane.f32.xlu0 %v1621
        %v1623 = vpop.xlane.xlu0 %1622
        %v1624 = vlog2.pop %v1623
        %v1625 = vmul.f32 %v1624, 0.6931472
        %v1626 = vadd.f32 %v1617, %v1625
        %v1627 = vsub.f32 %v1611, %v1626
        %v1628 = vld [vmem:[#allocation2] sm:$0x3]
        %v1629 = vadd.f32 %v1628, %v1627
        %1630 = vst.msk [vmem:[#allocation2] sm:$0x3] %vm1614, %v1629
        %v1631 = vld [vmem:[#allocation4] sm:$0x1]
        %v1632 = vstv %s1257
        %v1633 = vadd.f32 %v1631, %v1632
        %vm1634 = vcmask 0
        %1635 = vst.msk [vmem:[#allocation4] sm:$0x1] %vm1634, %v1633
        %v1636 = vld [vmem:[#allocation6] sm:$0x1]
        %v1637 = vstv %s727
        %v1638 = vadd.f32 %v1636, %v1637
        %1639 = vst.msk [vmem:[#allocation6] sm:$0x1] %vm1634, %v1638
        %p1640 = scmp.eq.s32.totalorder %s21, 2
        // Predicated region
        $region45: #{net_forward.1} parent=39 // pred_check
          %p1641 = pneg %p1640
        $region46: #{net_forward.1} parent=39 // pred_check_branch
          %1643 = sbr.rel (%p1641) target = $region48
        $region47: #{net_forward.1} parent=39 // pred_region
          %v1644 = vld [vmem:[#allocation2] sm:$0x3]
          %v1645 = vmul.f32 %v1644, 0.33333334
          %1646 = vst.msk [vmem:[#allocation2] sm:$0x3] %vm1614, %v1645
          %v1647 = vld [vmem:[#allocation4] sm:$0x1]
          %v1648 = vmul.f32 %v1647, 0.33333334
          %1649 = vst.msk [vmem:[#allocation4] sm:$0x1] %vm1634, %v1648
          %v1650 = vld [vmem:[#allocation6] sm:$0x1]
          %v1651 = vmul.f32 %v1650, 0.33333334
          %1652 = vst.msk [vmem:[#allocation6] sm:$0x1] %vm1634, %v1651
        $region48: #{net_forward.1} parent=39 // pred_fallthru
          _
        // Predicated region
        $region49: #{net_forward.1} parent=39 // pred_check
          %p1653 = pneg %p144
        $region50: #{net_forward.1} parent=39 // pred_check_branch
          %1655 = sbr.rel (%p1653) target = $region52
        $region51: #{net_forward.1} parent=39 // pred_region
          %s1657 = ssub.s32 32, 32
          %1658 = vsyncadd [#allocation3], %s1657
          %s1660 = sshll.u32 [#allocation2], 4
          %s1661 = int_to_ptr.vmem [resolvable:$true] %s1660
          %1663 = dma.vmem_to_hbm [thread:$0]  %s1661, 32, %s5, [#allocation3]
        $region52: #{net_forward.1} parent=39 // pred_fallthru
          _
        // Predicated region
        $region53: #{net_forward.1} parent=39 // pred_check
          %p1664 = pneg %p165
        $region54: #{net_forward.1} parent=39 // pred_check_branch
          %1666 = sbr.rel (%p1664) target = $region56
        $region55: #{net_forward.1} parent=39 // pred_region
          %s1668 = ssub.s32 16, 16
          %1669 = vsyncadd [#allocation5], %s1668
          %s1671 = sshll.u32 [#allocation4], 4
          %s1672 = int_to_ptr.vmem [resolvable:$true] %s1671
          %1674 = dma.vmem_to_hbm [thread:$0]  %s1672, 16, %s6, [#allocation5]
        $region56: #{net_forward.1} parent=39 // pred_fallthru
          _
        // Predicated region
        $region57: #{net_forward.1} parent=39 // pred_check
          %p1675 = pneg %p186
        $region58: #{net_forward.1} parent=39 // pred_check_branch
          %1677 = sbr.rel (%p1675) target = $region60
        $region59: #{net_forward.1} parent=39 // pred_region
          %s1679 = ssub.s32 16, 16
          %1680 = vsyncadd [#allocation5], %s1679
          %s1682 = sshll.u32 [#allocation6], 4
          %s1683 = int_to_ptr.vmem [resolvable:$true] %s1682
          %1685 = dma.vmem_to_hbm [thread:$0]  %s1683, 16, %s7, [#allocation5]
        $region60: #{net_forward.1} parent=39 // pred_fallthru
          _
        // Predicated region
        $region61: #{net_forward.1} parent=39 // pred_check
          %p1686 = pneg %p144
        $region62: #{net_forward.1} parent=39 // pred_check_branch
          %1688 = sbr.rel (%p1686) target = $region64
        $region63: #{net_forward.1} parent=39 // pred_region
          %1689 = dma.done [#allocation3], 32
        $region64: #{net_forward.1} parent=39 // pred_fallthru
          _
        // Predicated region
        $region65: #{net_forward.1} parent=39 // pred_check
          %p1690 = pneg %p165
        $region66: #{net_forward.1} parent=39 // pred_check_branch
          %1692 = sbr.rel (%p1690) target = $region68
        $region67: #{net_forward.1} parent=39 // pred_region
          %1693 = dma.done [#allocation5], 16
        $region68: #{net_forward.1} parent=39 // pred_fallthru
          _
        // Predicated region
        $region69: #{net_forward.1} parent=39 // pred_check
          %p1694 = pneg %p186
        $region70: #{net_forward.1} parent=39 // pred_check_branch
          %1696 = sbr.rel (%p1694) target = $region72
        $region71: #{net_forward.1} parent=39 // pred_region
          %1697 = dma.done [#allocation5], 16
        $region72: #{net_forward.1} parent=39 // pred_fallthru
          _
      $region40: #{net_forward.1} parent=5 // pred_fallthru
        _
      %p1698 = scmp.le.s32.totalorder 2, %s16
      // Predicated region
      $region73: #{net_forward.1} parent=5 // pred_check
        %p1699 = pneg %p1698
      $region74: #{net_forward.1} parent=5 // pred_check_branch
        %1701 = sbr.rel (%p1699) target = $region76
      $region75: #{net_forward.1} parent=5 // pred_region
        %s1702 = ssub.s32 %s16, 2
      $region76: #{net_forward.1} parent=5 // pred_fallthru
        _
    $region6: #{net_forward.1} parent=1 // loop_footer
      %s20 = sadd.s32 1, %s16
    $region7: #{net_forward.1} parent=1 // loop_footer_branch
      %15 = sbr.rel target = $region3
    $region8: #{net_forward.1} parent=1 // loop_exit
      _
    %1703 = vsyncpa [#allocation3], 1
    %s1704 = scalar_lea.sflag [#allocation3], 1
    %1705 = vsyncpa %s1704, 1
    %1706 = vsyncpa [#allocation5], 1

</llo_original>
